<compile_context>
chip_gen: v7x
topology: tpu7x:2x2x1
jax: 0.10.0
libtpu: 0.0.40
codegen_flags: <defaults>
</compile_context>

<pallas_src>
import numpy as np

import jax
import jax.numpy as jnp
from jax.experimental import pallas as pl
from jax.experimental.pallas import tpu as pltpu


def _round_up(n, m):
    return ((n + m - 1) // m) * m


def _mlp_kernel(x_ref,
                w1, t1, w2, t2, w3, t3, w4, t4, w5, t5,
                out_ref):
    """Fused 5-layer MLP forward: (matmul + shift + ReLU) x4 + final matmul."""

    def layer(h, w_r, t_r, relu):
        # Matmul operands in the weight dtype (f32 or bf16), f32 accumulation;
        # shift-add and ReLU always in f32 (VPU-safe on every generation).
        y = jnp.dot(h.astype(w_r.dtype), w_r[...],
                    preferred_element_type=jnp.float32) + t_r[...]
        return jnp.maximum(y, 0.0) if relu else y

    h = x_ref[...]            # already in the streamed/compute dtype
    h = layer(h, w1, t1, True)
    h = layer(h, w2, t2, True)
    h = layer(h, w3, t3, True)
    h = layer(h, w4, t4, True)
    out_ref[...] = layer(h, w5, t5, False).astype(out_ref.dtype)


def mlp_forward(x, params, *, tile_n=512, compute_dtype=jnp.float32,
                out_dtype=jnp.float32):
    """x: [N, input_dim]. params: dict of weights (see init_params)."""
    eps = 1e-5
    N, input_dim = x.shape
    hidden_dim = params["w1"].shape[1]
    latent_dim = params["w5"].shape[1]

    comp_bytes = np.dtype(compute_dtype).itemsize
    out_bytes = np.dtype(out_dtype).itemsize
    # Sublane alignment: bf16 packs 16 rows per vreg.
    sub = 16 if (comp_bytes == 2 or out_bytes == 2) else 8

    # Lane-pad hidden/latent dims to 128; input_dim is streamed unpadded.
    d_h = _round_up(hidden_dim, 128)
    d_lat = _round_up(latent_dim, 128)

    # --- Fold BatchNorm1d (running stats + affine) into weights / shifts. ---
    weights, shifts = [], []
    for i in range(1, 5):
        w, b = params[f"w{i}"], params[f"b{i}"]
        gamma, beta = params[f"bn{i}_gamma"], params[f"bn{i}_beta"]
        mean, var = params[f"bn{i}_mean"], params[f"bn{i}_var"]
        scale = gamma / jnp.sqrt(var + eps)
        w_f = w * scale[None, :]                 # W' = W * scale
        t_f = (b - mean) * scale + beta          # t' = (b - mean)*scale + beta
        k_pad = 0 if i == 1 else d_h - hidden_dim   # layer 1 keeps K=input_dim
        w_f = jnp.pad(w_f, ((0, k_pad), (0, d_h - hidden_dim)))
        t_f = jnp.pad(t_f, (0, d_h - hidden_dim))
        weights.append(w_f.astype(compute_dtype))
        shifts.append(t_f[None, :].astype(jnp.float32))
    w5 = jnp.pad(params["w5"], ((0, d_h - hidden_dim),
                                (0, d_lat - latent_dim)))
    t5 = jnp.pad(params["b5"], (0, d_lat - latent_dim))
    weights.append(w5.astype(compute_dtype))
    shifts.append(t5[None, :].astype(jnp.float32))

    # --- Batch tiling: balanced tiles, >=2 grid steps when possible (v7x). ---
    n_sub = _round_up(max(N, 1), sub)
    steps = max(pl.cdiv(n_sub, tile_n), 1)
    if n_sub >= 2 * sub:
        steps = max(steps, 2)          # let both v7x TensorCores get a tile
    tile = _round_up(pl.cdiv(n_sub, steps), sub)
    steps = pl.cdiv(n_sub, tile)
    n_pad = tile * steps

    # x streamed in the compute dtype, feature dim unpadded (full last dim).
    x_p = jnp.pad(x.astype(compute_dtype), ((0, n_pad - N), (0, 0)))

    args = [x_p]
    for w, t in zip(weights, shifts):
        args += [w, t]

    def _vmem_limit(single_buffer):
        res_mult = 1 if single_buffer else 2
        resident_bytes = res_mult * sum(int(a.nbytes) for a in args[1:])
        io_bytes = 2 * tile * (input_dim * comp_bytes + d_lat * out_bytes)
        need = int(1.3 * (resident_bytes + io_bytes)) + (4 << 20)
        try:
            cap = int(pltpu.get_tpu_info().vmem_capacity_bytes)
        except Exception:
            cap = 64 << 20
        return int(min(max(need, 16 << 20), int(0.7 * cap)))

    def _build(single_buffer):
        if single_buffer:
            def resident(shape):
                return pl.BlockSpec(shape, lambda i: (0, 0),
                                    pipeline_mode=pl.Buffered(1))
        else:
            def resident(shape):
                return pl.BlockSpec(shape, lambda i: (0, 0))

        in_specs = [pl.BlockSpec((tile, input_dim), lambda i: (i, 0))]
        for w, t in zip(weights, shifts):
            in_specs += [resident(w.shape), resident(t.shape)]
        out_spec = pl.BlockSpec((tile, d_lat), lambda i: (i, 0))

        return pl.pallas_call(
            _mlp_kernel,
            out_shape=jax.ShapeDtypeStruct((n_pad, d_lat), out_dtype),
            grid=(steps,),
            in_specs=in_specs,
            out_specs=out_spec,
            compiler_params=pltpu.CompilerParams(
                dimension_semantics=("parallel",),
                vmem_limit_bytes=_vmem_limit(single_buffer)),
        )

    try:
        out = _build(True)(*args)          # single-buffered resident weights
    except Exception:
        # Fallback: default double-buffered resident operands (older jax).
        out = _build(False)(*args)
    return out[:N, :latent_dim]


def init_params(key, input_dim, hidden_dim, latent_dim):
    """Deterministic synthetic parameters matching the PyTorch module shapes.

    Linear weights stored transposed as [in, out]; biases as [out].
    BatchNorm params: gamma/beta/running_mean/running_var, all [hidden_dim].
    """
    dims = [(input_dim, hidden_dim),
            (hidden_dim, hidden_dim),
            (hidden_dim, hidden_dim),
            (hidden_dim, hidden_dim),
            (hidden_dim, latent_dim)]
    params = {}
    for i, (din, dout) in enumerate(dims, start=1):
        key, kw, kb = jax.random.split(key, 3)
        bound = 1.0 / jnp.sqrt(din)
        params[f"w{i}"] = jax.random.uniform(kw, (din, dout), jnp.float32,
                                             -bound, bound)
        params[f"b{i}"] = jax.random.uniform(kb, (dout,), jnp.float32,
                                             -bound, bound)
    for i in range(1, 5):
        key, kg, kb, km, kv = jax.random.split(key, 5)
        params[f"bn{i}_gamma"] = 1.0 + 0.1 * jax.random.normal(kg, (hidden_dim,), jnp.float32)
        params[f"bn{i}_beta"] = 0.1 * jax.random.normal(kb, (hidden_dim,), jnp.float32)
        params[f"bn{i}_mean"] = 0.1 * jax.random.normal(km, (hidden_dim,), jnp.float32)
        params[f"bn{i}_var"] = 1.0 + 0.1 * jax.random.uniform(kv, (hidden_dim,), jnp.float32)
    return params


def mlp_reference(x, params):
    """Pure-JAX reference (eval-mode), for correctness check."""
    eps = 1e-5
    h = x
    for i in range(1, 5):
        h = h @ params[f"w{i}"] + params[f"b{i}"]
        scale = params[f"bn{i}_gamma"] / jnp.sqrt(params[f"bn{i}_var"] + eps)
        shift = params[f"bn{i}_beta"] - params[f"bn{i}_mean"] * scale
        h = jnp.maximum(h * scale + shift, 0.0)
    return h @ params["w5"] + params["b5"]


if __name__ == "__main__":
    input_dim, hidden_dim, latent_dim = 32, 32, 16
    N = 8  # number of rows in data.x

    key = jax.random.PRNGKey(0)
    key, kx = jax.random.split(key)
    x = jax.random.normal(kx, (N, input_dim), jnp.float32)
    params = init_params(key, input_dim, hidden_dim, latent_dim)

    ref = mlp_reference(x, params)

    # f32 path: must match the reference tightly.
    out = jax.block_until_ready(mlp_forward(x, params))
    assert out.shape == (N, latent_dim)
    assert jnp.allclose(out, ref, atol=1e-4, rtol=1e-4), "mismatch vs reference (f32)"

    # bf16-weight/activation-stream path (MXU-friendly on v5e/v6e/v7x):
    # looser tolerance from bf16 rounding compounding over 5 layers.
    out_bf16 = jax.block_until_ready(
        mlp_forward(x, params, compute_dtype=jnp.bfloat16))
    assert out_bf16.shape == (N, latent_dim)
    assert jnp.allclose(out_bf16, ref, atol=1e-1, rtol=1e-1), "mismatch vs reference (bf16)"

    print("KERNEL_OK")
</pallas_src>

<mosaic_0001>
module attributes {stable_mosaic.version = 11 : i64} {
  func.func @_mlp_kernel(%arg0: i32, %arg1: memref<8x32xf32, #tpu.memory_space<vmem>>, %arg2: memref<32x128xf32, #tpu.memory_space<vmem>>, %arg3: memref<1x128xf32, #tpu.memory_space<vmem>>, %arg4: memref<128x128xf32, #tpu.memory_space<vmem>>, %arg5: memref<1x128xf32, #tpu.memory_space<vmem>>, %arg6: memref<128x128xf32, #tpu.memory_space<vmem>>, %arg7: memref<1x128xf32, #tpu.memory_space<vmem>>, %arg8: memref<128x128xf32, #tpu.memory_space<vmem>>, %arg9: memref<1x128xf32, #tpu.memory_space<vmem>>, %arg10: memref<128x128xf32, #tpu.memory_space<vmem>>, %arg11: memref<1x128xf32, #tpu.memory_space<vmem>>, %arg12: memref<8x128xf32, #tpu.memory_space<vmem>>) attributes {dimension_semantics = [#tpu.dimension_semantics<parallel>], iteration_bounds = array<i64: 1>, scalar_prefetch = 0 : i64, scratch_operands = 0 : i64, tpu.core_type = #tpu.core_type<tc>, window_params = [{transform_indices = @transform_0, window_bounds = array<i64: 8, 32>}, {pipeline_mode = #tpu.pipeline_mode<synchronous>, transform_indices = @transform_1, window_bounds = array<i64: 32, 128>}, {pipeline_mode = #tpu.pipeline_mode<synchronous>, transform_indices = @transform_2, window_bounds = array<i64: 1, 128>}, {pipeline_mode = #tpu.pipeline_mode<synchronous>, transform_indices = @transform_3, window_bounds = array<i64: 128, 128>}, {pipeline_mode = #tpu.pipeline_mode<synchronous>, transform_indices = @transform_4, window_bounds = array<i64: 1, 128>}, {pipeline_mode = #tpu.pipeline_mode<synchronous>, transform_indices = @transform_5, window_bounds = array<i64: 128, 128>}, {pipeline_mode = #tpu.pipeline_mode<synchronous>, transform_indices = @transform_6, window_bounds = array<i64: 1, 128>}, {pipeline_mode = #tpu.pipeline_mode<synchronous>, transform_indices = @transform_7, window_bounds = array<i64: 128, 128>}, {pipeline_mode = #tpu.pipeline_mode<synchronous>, transform_indices = @transform_8, window_bounds = array<i64: 1, 128>}, {pipeline_mode = #tpu.pipeline_mode<synchronous>, transform_indices = @transform_9, window_bounds = array<i64: 128, 128>}, {pipeline_mode = #tpu.pipeline_mode<synchronous>, transform_indices = @transform_10, window_bounds = array<i64: 1, 128>}, {transform_indices = @transform_11, window_bounds = array<i64: 8, 128>}]} {
    %c0 = arith.constant 0 : index
    %c0_0 = arith.constant 0 : index
    %0 = vector.load %arg1[%c0, %c0_0] : memref<8x32xf32, #tpu.memory_space<vmem>>, vector<8x32xf32>
    %c0_1 = arith.constant 0 : index
    %c0_2 = arith.constant 0 : index
    %1 = vector.load %arg2[%c0_1, %c0_2] : memref<32x128xf32, #tpu.memory_space<vmem>>, vector<32x128xf32>
    %cst = arith.constant dense<0.000000e+00> : vector<8x128xf32>
    %2 = tpu.matmul %0, %1, %cst {dimension_numbers = #tpu.dot_dimension_numbers<[1], [0], [0], [1], [0, 0, 1, 1], [], []>} : vector<8x32xf32>, vector<32x128xf32>, vector<8x128xf32> -> vector<8x128xf32>
    %c0_3 = arith.constant 0 : index
    %c0_4 = arith.constant 0 : index
    %3 = vector.load %arg3[%c0_3, %c0_4] : memref<1x128xf32, #tpu.memory_space<vmem>>, vector<1x128xf32>
    %4 = vector.broadcast %3 : vector<1x128xf32> to vector<8x128xf32>
    %5 = arith.addf %2, %4 : vector<8x128xf32>
    %cst_5 = arith.constant 0.000000e+00 : f32
    %6 = vector.broadcast %cst_5 : f32 to vector<8x128xf32>
    %7 = arith.maximumf %5, %6 : vector<8x128xf32>
    %c0_6 = arith.constant 0 : index
    %c0_7 = arith.constant 0 : index
    %8 = vector.load %arg4[%c0_6, %c0_7] : memref<128x128xf32, #tpu.memory_space<vmem>>, vector<128x128xf32>
    %cst_8 = arith.constant dense<0.000000e+00> : vector<8x128xf32>
    %9 = tpu.matmul %7, %8, %cst_8 {dimension_numbers = #tpu.dot_dimension_numbers<[1], [0], [0], [1], [0, 0, 1, 1], [], []>} : vector<8x128xf32>, vector<128x128xf32>, vector<8x128xf32> -> vector<8x128xf32>
    %c0_9 = arith.constant 0 : index
    %c0_10 = arith.constant 0 : index
    %10 = vector.load %arg5[%c0_9, %c0_10] : memref<1x128xf32, #tpu.memory_space<vmem>>, vector<1x128xf32>
    %11 = vector.broadcast %10 : vector<1x128xf32> to vector<8x128xf32>
    %12 = arith.addf %9, %11 : vector<8x128xf32>
    %cst_11 = arith.constant 0.000000e+00 : f32
    %13 = vector.broadcast %cst_11 : f32 to vector<8x128xf32>
    %14 = arith.maximumf %12, %13 : vector<8x128xf32>
    %c0_12 = arith.constant 0 : index
    %c0_13 = arith.constant 0 : index
    %15 = vector.load %arg6[%c0_12, %c0_13] : memref<128x128xf32, #tpu.memory_space<vmem>>, vector<128x128xf32>
    %cst_14 = arith.constant dense<0.000000e+00> : vector<8x128xf32>
    %16 = tpu.matmul %14, %15, %cst_14 {dimension_numbers = #tpu.dot_dimension_numbers<[1], [0], [0], [1], [0, 0, 1, 1], [], []>} : vector<8x128xf32>, vector<128x128xf32>, vector<8x128xf32> -> vector<8x128xf32>
    %c0_15 = arith.constant 0 : index
    %c0_16 = arith.constant 0 : index
    %17 = vector.load %arg7[%c0_15, %c0_16] : memref<1x128xf32, #tpu.memory_space<vmem>>, vector<1x128xf32>
    %18 = vector.broadcast %17 : vector<1x128xf32> to vector<8x128xf32>
    %19 = arith.addf %16, %18 : vector<8x128xf32>
    %cst_17 = arith.constant 0.000000e+00 : f32
    %20 = vector.broadcast %cst_17 : f32 to vector<8x128xf32>
    %21 = arith.maximumf %19, %20 : vector<8x128xf32>
    %c0_18 = arith.constant 0 : index
    %c0_19 = arith.constant 0 : index
    %22 = vector.load %arg8[%c0_18, %c0_19] : memref<128x128xf32, #tpu.memory_space<vmem>>, vector<128x128xf32>
    %cst_20 = arith.constant dense<0.000000e+00> : vector<8x128xf32>
    %23 = tpu.matmul %21, %22, %cst_20 {dimension_numbers = #tpu.dot_dimension_numbers<[1], [0], [0], [1], [0, 0, 1, 1], [], []>} : vector<8x128xf32>, vector<128x128xf32>, vector<8x128xf32> -> vector<8x128xf32>
    %c0_21 = arith.constant 0 : index
    %c0_22 = arith.constant 0 : index
    %24 = vector.load %arg9[%c0_21, %c0_22] : memref<1x128xf32, #tpu.memory_space<vmem>>, vector<1x128xf32>
    %25 = vector.broadcast %24 : vector<1x128xf32> to vector<8x128xf32>
    %26 = arith.addf %23, %25 : vector<8x128xf32>
    %cst_23 = arith.constant 0.000000e+00 : f32
    %27 = vector.broadcast %cst_23 : f32 to vector<8x128xf32>
    %28 = arith.maximumf %26, %27 : vector<8x128xf32>
    %c0_24 = arith.constant 0 : index
    %c0_25 = arith.constant 0 : index
    %29 = vector.load %arg10[%c0_24, %c0_25] : memref<128x128xf32, #tpu.memory_space<vmem>>, vector<128x128xf32>
    %cst_26 = arith.constant dense<0.000000e+00> : vector<8x128xf32>
    %30 = tpu.matmul %28, %29, %cst_26 {dimension_numbers = #tpu.dot_dimension_numbers<[1], [0], [0], [1], [0, 0, 1, 1], [], []>} : vector<8x128xf32>, vector<128x128xf32>, vector<8x128xf32> -> vector<8x128xf32>
    %c0_27 = arith.constant 0 : index
    %c0_28 = arith.constant 0 : index
    %31 = vector.load %arg11[%c0_27, %c0_28] : memref<1x128xf32, #tpu.memory_space<vmem>>, vector<1x128xf32>
    %32 = vector.broadcast %31 : vector<1x128xf32> to vector<8x128xf32>
    %33 = arith.addf %30, %32 : vector<8x128xf32>
    %c0_29 = arith.constant 0 : index
    %c0_30 = arith.constant 0 : index
    %34 = vector.load %arg12[%c0_29, %c0_30] : memref<8x128xf32, #tpu.memory_space<vmem>>, vector<8x128xf32>
    tpu.vector_store %arg12[%c0_29, %c0_30], %33 {strides = array<i32>} : memref<8x128xf32, #tpu.memory_space<vmem>>, vector<8x128xf32>,
    return
  }
  func.func @transform_0(%arg0: i32) -> (i32, i32) {
    %c0_i32 = arith.constant 0 : i32
    %c0_i32_0 = arith.constant 0 : i32
    return %arg0, %c0_i32 : i32, i32
  }
  func.func @transform_1(%arg0: i32) -> (i32, i32) {
    %c0_i32 = arith.constant 0 : i32
    %c0_i32_0 = arith.constant 0 : i32
    %c0_i32_1 = arith.constant 0 : i32
    return %c0_i32, %c0_i32_0 : i32, i32
  }
  func.func @transform_2(%arg0: i32) -> (i32, i32) {
    %c0_i32 = arith.constant 0 : i32
    %c0_i32_0 = arith.constant 0 : i32
    %c0_i32_1 = arith.constant 0 : i32
    return %c0_i32, %c0_i32_0 : i32, i32
  }
  func.func @transform_3(%arg0: i32) -> (i32, i32) {
    %c0_i32 = arith.constant 0 : i32
    %c0_i32_0 = arith.constant 0 : i32
    %c0_i32_1 = arith.constant 0 : i32
    return %c0_i32, %c0_i32_0 : i32, i32
  }
  func.func @transform_4(%arg0: i32) -> (i32, i32) {
    %c0_i32 = arith.constant 0 : i32
    %c0_i32_0 = arith.constant 0 : i32
    %c0_i32_1 = arith.constant 0 : i32
    return %c0_i32, %c0_i32_0 : i32, i32
  }
  func.func @transform_5(%arg0: i32) -> (i32, i32) {
    %c0_i32 = arith.constant 0 : i32
    %c0_i32_0 = arith.constant 0 : i32
    %c0_i32_1 = arith.constant 0 : i32
    return %c0_i32, %c0_i32_0 : i32, i32
  }
  func.func @transform_6(%arg0: i32) -> (i32, i32) {
    %c0_i32 = arith.constant 0 : i32
    %c0_i32_0 = arith.constant 0 : i32
    %c0_i32_1 = arith.constant 0 : i32
    return %c0_i32, %c0_i32_0 : i32, i32
  }
  func.func @transform_7(%arg0: i32) -> (i32, i32) {
    %c0_i32 = arith.constant 0 : i32
    %c0_i32_0 = arith.constant 0 : i32
    %c0_i32_1 = arith.constant 0 : i32
    return %c0_i32, %c0_i32_0 : i32, i32
  }
  func.func @transform_8(%arg0: i32) -> (i32, i32) {
    %c0_i32 = arith.constant 0 : i32
    %c0_i32_0 = arith.constant 0 : i32
    %c0_i32_1 = arith.constant 0 : i32
    return %c0_i32, %c0_i32_0 : i32, i32
  }
  func.func @transform_9(%arg0: i32) -> (i32, i32) {
    %c0_i32 = arith.constant 0 : i32
    %c0_i32_0 = arith.constant 0 : i32
    %c0_i32_1 = arith.constant 0 : i32
    return %c0_i32, %c0_i32_0 : i32, i32
  }
  func.func @transform_10(%arg0: i32) -> (i32, i32) {
    %c0_i32 = arith.constant 0 : i32
    %c0_i32_0 = arith.constant 0 : i32
    %c0_i32_1 = arith.constant 0 : i32
    return %c0_i32, %c0_i32_0 : i32, i32
  }
  func.func @transform_11(%arg0: i32) -> (i32, i32) {
    %c0_i32 = arith.constant 0 : i32
    %c0_i32_0 = arith.constant 0 : i32
    return %arg0, %c0_i32 : i32, i32
  }
}

module attributes {stable_mosaic.version = 11 : i64} {
  func.func @_mlp_kernel(%arg0: i32, %arg1: memref<8x32xf32, #tpu.memory_space<vmem>>, %arg2: memref<32x128xf32, #tpu.memory_space<vmem>>, %arg3: memref<1x128xf32, #tpu.memory_space<vmem>>, %arg4: memref<128x128xf32, #tpu.memory_space<vmem>>, %arg5: memref<1x128xf32, #tpu.memory_space<vmem>>, %arg6: memref<128x128xf32, #tpu.memory_space<vmem>>, %arg7: memref<1x128xf32, #tpu.memory_space<vmem>>, %arg8: memref<128x128xf32, #tpu.memory_space<vmem>>, %arg9: memref<1x128xf32, #tpu.memory_space<vmem>>, %arg10: memref<128x128xf32, #tpu.memory_space<vmem>>, %arg11: memref<1x128xf32, #tpu.memory_space<vmem>>, %arg12: memref<8x128xf32, #tpu.memory_space<vmem>>) attributes {dimension_semantics = [#tpu.dimension_semantics<parallel>], iteration_bounds = array<i64: 1>, scalar_prefetch = 0 : i64, scratch_operands = 0 : i64, tpu.core_type = #tpu.core_type<tc>, window_params = [{transform_indices = @transform_0, window_bounds = array<i64: 8, 32>}, {pipeline_mode = #tpu.pipeline_mode<synchronous>, transform_indices = @transform_1, window_bounds = array<i64: 32, 128>}, {pipeline_mode = #tpu.pipeline_mode<synchronous>, transform_indices = @transform_2, window_bounds = array<i64: 1, 128>}, {pipeline_mode = #tpu.pipeline_mode<synchronous>, transform_indices = @transform_3, window_bounds = array<i64: 128, 128>}, {pipeline_mode = #tpu.pipeline_mode<synchronous>, transform_indices = @transform_4, window_bounds = array<i64: 1, 128>}, {pipeline_mode = #tpu.pipeline_mode<synchronous>, transform_indices = @transform_5, window_bounds = array<i64: 128, 128>}, {pipeline_mode = #tpu.pipeline_mode<synchronous>, transform_indices = @transform_6, window_bounds = array<i64: 1, 128>}, {pipeline_mode = #tpu.pipeline_mode<synchronous>, transform_indices = @transform_7, window_bounds = array<i64: 128, 128>}, {pipeline_mode = #tpu.pipeline_mode<synchronous>, transform_indices = @transform_8, window_bounds = array<i64: 1, 128>}, {pipeline_mode = #tpu.pipeline_mode<synchronous>, transform_indices = @transform_9, window_bounds = array<i64: 128, 128>}, {pipeline_mode = #tpu.pipeline_mode<synchronous>, transform_indices = @transform_10, window_bounds = array<i64: 1, 128>}, {transform_indices = @transform_11, window_bounds = array<i64: 8, 128>}]} {
    %c0 = arith.constant 0 : index
    %c0_0 = arith.constant 0 : index
    %0 = vector.load %arg1[%c0, %c0_0] : memref<8x32xf32, #tpu.memory_space<vmem>>, vector<8x32xf32>
    %c0_1 = arith.constant 0 : index
    %c0_2 = arith.constant 0 : index
    %1 = vector.load %arg2[%c0_1, %c0_2] : memref<32x128xf32, #tpu.memory_space<vmem>>, vector<32x128xf32>
    %cst = arith.constant dense<0.000000e+00> : vector<8x128xf32>
    %2 = tpu.matmul %0, %1, %cst {dimension_numbers = #tpu.dot_dimension_numbers<[1], [0], [0], [1], [0, 0, 1, 1], [], []>} : vector<8x32xf32>, vector<32x128xf32>, vector<8x128xf32> -> vector<8x128xf32>
    %c0_3 = arith.constant 0 : index
    %c0_4 = arith.constant 0 : index
    %3 = vector.load %arg3[%c0_3, %c0_4] : memref<1x128xf32, #tpu.memory_space<vmem>>, vector<1x128xf32>
    %4 = vector.broadcast %3 : vector<1x128xf32> to vector<8x128xf32>
    %5 = arith.addf %2, %4 : vector<8x128xf32>
    %cst_5 = arith.constant 0.000000e+00 : f32
    %6 = vector.broadcast %cst_5 : f32 to vector<8x128xf32>
    %7 = arith.maximumf %5, %6 : vector<8x128xf32>
    %c0_6 = arith.constant 0 : index
    %c0_7 = arith.constant 0 : index
    %8 = vector.load %arg4[%c0_6, %c0_7] : memref<128x128xf32, #tpu.memory_space<vmem>>, vector<128x128xf32>
    %cst_8 = arith.constant dense<0.000000e+00> : vector<8x128xf32>
    %9 = tpu.matmul %7, %8, %cst_8 {dimension_numbers = #tpu.dot_dimension_numbers<[1], [0], [0], [1], [0, 0, 1, 1], [], []>} : vector<8x128xf32>, vector<128x128xf32>, vector<8x128xf32> -> vector<8x128xf32>
    %c0_9 = arith.constant 0 : index
    %c0_10 = arith.constant 0 : index
    %10 = vector.load %arg5[%c0_9, %c0_10] : memref<1x128xf32, #tpu.memory_space<vmem>>, vector<1x128xf32>
    %11 = vector.broadcast %10 : vector<1x128xf32> to vector<8x128xf32>
    %12 = arith.addf %9, %11 : vector<8x128xf32>
    %cst_11 = arith.constant 0.000000e+00 : f32
    %13 = vector.broadcast %cst_11 : f32 to vector<8x128xf32>
    %14 = arith.maximumf %12, %13 : vector<8x128xf32>
    %c0_12 = arith.constant 0 : index
    %c0_13 = arith.constant 0 : index
    %15 = vector.load %arg6[%c0_12, %c0_13] : memref<128x128xf32, #tpu.memory_space<vmem>>, vector<128x128xf32>
    %cst_14 = arith.constant dense<0.000000e+00> : vector<8x128xf32>
    %16 = tpu.matmul %14, %15, %cst_14 {dimension_numbers = #tpu.dot_dimension_numbers<[1], [0], [0], [1], [0, 0, 1, 1], [], []>} : vector<8x128xf32>, vector<128x128xf32>, vector<8x128xf32> -> vector<8x128xf32>
    %c0_15 = arith.constant 0 : index
    %c0_16 = arith.constant 0 : index
    %17 = vector.load %arg7[%c0_15, %c0_16] : memref<1x128xf32, #tpu.memory_space<vmem>>, vector<1x128xf32>
    %18 = vector.broadcast %17 : vector<1x128xf32> to vector<8x128xf32>
    %19 = arith.addf %16, %18 : vector<8x128xf32>
    %cst_17 = arith.constant 0.000000e+00 : f32
    %20 = vector.broadcast %cst_17 : f32 to vector<8x128xf32>
    %21 = arith.maximumf %19, %20 : vector<8x128xf32>
    %c0_18 = arith.constant 0 : index
    %c0_19 = arith.constant 0 : index
    %22 = vector.load %arg8[%c0_18, %c0_19] : memref<128x128xf32, #tpu.memory_space<vmem>>, vector<128x128xf32>
    %cst_20 = arith.constant dense<0.000000e+00> : vector<8x128xf32>
    %23 = tpu.matmul %21, %22, %cst_20 {dimension_numbers = #tpu.dot_dimension_numbers<[1], [0], [0], [1], [0, 0, 1, 1], [], []>} : vector<8x128xf32>, vector<128x128xf32>, vector<8x128xf32> -> vector<8x128xf32>
    %c0_21 = arith.constant 0 : index
    %c0_22 = arith.constant 0 : index
    %24 = vector.load %arg9[%c0_21, %c0_22] : memref<1x128xf32, #tpu.memory_space<vmem>>, vector<1x128xf32>
    %25 = vector.broadcast %24 : vector<1x128xf32> to vector<8x128xf32>
    %26 = arith.addf %23, %25 : vector<8x128xf32>
    %cst_23 = arith.constant 0.000000e+00 : f32
    %27 = vector.broadcast %cst_23 : f32 to vector<8x128xf32>
    %28 = arith.maximumf %26, %27 : vector<8x128xf32>
    %c0_24 = arith.constant 0 : index
    %c0_25 = arith.constant 0 : index
    %29 = vector.load %arg10[%c0_24, %c0_25] : memref<128x128xf32, #tpu.memory_space<vmem>>, vector<128x128xf32>
    %cst_26 = arith.constant dense<0.000000e+00> : vector<8x128xf32>
    %30 = tpu.matmul %28, %29, %cst_26 {dimension_numbers = #tpu.dot_dimension_numbers<[1], [0], [0], [1], [0, 0, 1, 1], [], []>} : vector<8x128xf32>, vector<128x128xf32>, vector<8x128xf32> -> vector<8x128xf32>
    %c0_27 = arith.constant 0 : index
    %c0_28 = arith.constant 0 : index
    %31 = vector.load %arg11[%c0_27, %c0_28] : memref<1x128xf32, #tpu.memory_space<vmem>>, vector<1x128xf32>
    %32 = vector.broadcast %31 : vector<1x128xf32> to vector<8x128xf32>
    %33 = arith.addf %30, %32 : vector<8x128xf32>
    %c0_29 = arith.constant 0 : index
    %c0_30 = arith.constant 0 : index
    %34 = vector.load %arg12[%c0_29, %c0_30] : memref<8x128xf32, #tpu.memory_space<vmem>>, vector<8x128xf32>
    tpu.vector_store %arg12[%c0_29, %c0_30], %33 {strides = array<i32>} : memref<8x128xf32, #tpu.memory_space<vmem>>, vector<8x128xf32>,
    return
  }
  func.func @transform_0(%arg0: i32) -> (i32, i32) {
    %c0_i32 = arith.constant 0 : i32
    %c0_i32_0 = arith.constant 0 : i32
    return %arg0, %c0_i32 : i32, i32
  }
  func.func @transform_1(%arg0: i32) -> (i32, i32) {
    %c0_i32 = arith.constant 0 : i32
    %c0_i32_0 = arith.constant 0 : i32
    %c0_i32_1 = arith.constant 0 : i32
    return %c0_i32, %c0_i32_0 : i32, i32
  }
  func.func @transform_2(%arg0: i32) -> (i32, i32) {
    %c0_i32 = arith.constant 0 : i32
    %c0_i32_0 = arith.constant 0 : i32
    %c0_i32_1 = arith.constant 0 : i32
    return %c0_i32, %c0_i32_0 : i32, i32
  }
  func.func @transform_3(%arg0: i32) -> (i32, i32) {
    %c0_i32 = arith.constant 0 : i32
    %c0_i32_0 = arith.constant 0 : i32
    %c0_i32_1 = arith.constant 0 : i32
    return %c0_i32, %c0_i32_0 : i32, i32
  }
  func.func @transform_4(%arg0: i32) -> (i32, i32) {
    %c0_i32 = arith.constant 0 : i32
    %c0_i32_0 = arith.constant 0 : i32
    %c0_i32_1 = arith.constant 0 : i32
    return %c0_i32, %c0_i32_0 : i32, i32
  }
  func.func @transform_5(%arg0: i32) -> (i32, i32) {
    %c0_i32 = arith.constant 0 : i32
    %c0_i32_0 = arith.constant 0 : i32
    %c0_i32_1 = arith.constant 0 : i32
    return %c0_i32, %c0_i32_0 : i32, i32
  }
  func.func @transform_6(%arg0: i32) -> (i32, i32) {
    %c0_i32 = arith.constant 0 : i32
    %c0_i32_0 = arith.constant 0 : i32
    %c0_i32_1 = arith.constant 0 : i32
    return %c0_i32, %c0_i32_0 : i32, i32
  }
  func.func @transform_7(%arg0: i32) -> (i32, i32) {
    %c0_i32 = arith.constant 0 : i32
    %c0_i32_0 = arith.constant 0 : i32
    %c0_i32_1 = arith.constant 0 : i32
    return %c0_i32, %c0_i32_0 : i32, i32
  }
  func.func @transform_8(%arg0: i32) -> (i32, i32) {
    %c0_i32 = arith.constant 0 : i32
    %c0_i32_0 = arith.constant 0 : i32
    %c0_i32_1 = arith.constant 0 : i32
    return %c0_i32, %c0_i32_0 : i32, i32
  }
  func.func @transform_9(%arg0: i32) -> (i32, i32) {
    %c0_i32 = arith.constant 0 : i32
    %c0_i32_0 = arith.constant 0 : i32
    %c0_i32_1 = arith.constant 0 : i32
    return %c0_i32, %c0_i32_0 : i32, i32
  }
  func.func @transform_10(%arg0: i32) -> (i32, i32) {
    %c0_i32 = arith.constant 0 : i32
    %c0_i32_0 = arith.constant 0 : i32
    %c0_i32_1 = arith.constant 0 : i32
    return %c0_i32, %c0_i32_0 : i32, i32
  }
  func.func @transform_11(%arg0: i32) -> (i32, i32) {
    %c0_i32 = arith.constant 0 : i32
    %c0_i32_0 = arith.constant 0 : i32
    return %arg0, %c0_i32 : i32, i32
  }
}

</mosaic_0001>

<llo_original>
// kernel: tpu_custom_call.1
$region0: #{tpu_custom_call.1}
  #allocation0 [shape = 'u32[]', space=smem, size = 0x4, offset = 0x4, fixed_abs, tag = 'smem constant byte address 0x4 - core index']
  #allocation1 [shape = 'u32[144,128]{1,0:T(1,128)}', space=vmem, size = 0x12000, scoped, tag = 'internal scratch']
  %s0 = inlined_call_operand.hbm [shape: f32[8,32], index: 0, kind: input, shape index: {}]
  %s1 = inlined_call_operand.hbm [shape: f32[32,128], index: 1, kind: input, shape index: {}]
  %s2 = inlined_call_operand.vmem [shape: f32[1,128], index: 2, kind: input, shape index: {}]
  %s3 = inlined_call_operand.hbm [shape: f32[128,128], index: 3, kind: input, shape index: {}]
  %s4 = inlined_call_operand.vmem [shape: f32[1,128], index: 4, kind: input, shape index: {}]
  %s5 = inlined_call_operand.hbm [shape: f32[128,128], index: 5, kind: input, shape index: {}]
  %s6 = inlined_call_operand.vmem [shape: f32[1,128], index: 6, kind: input, shape index: {}]
  %s7 = inlined_call_operand.hbm [shape: f32[128,128], index: 7, kind: input, shape index: {}]
  %s8 = inlined_call_operand.vmem [shape: f32[1,128], index: 8, kind: input, shape index: {}]
  %s9 = inlined_call_operand.hbm [shape: f32[128,128], index: 9, kind: input, shape index: {}]
  %s10 = inlined_call_operand.vmem [shape: f32[1,128], index: 10, kind: input, shape index: {}]
  %s11 = inlined_call_operand.hbm [shape: f32[8,128], index: 11, kind: output, shape index: {}]
  %s12 = sld [smem:[#allocation0]]
  $region78: #{tpu_custom_call.1} parent=0
    _
  %s14 = ssub.s32 1, %s12
  %s15 = scalar_select 0, %s14, %s12
  $region1: #{tpu_custom_call.1} parent=0
    #allocation2 [shape = 'u8[4096]{0}', space=vmem, size = 0x1000, scoped, tag = 'input window, operand 0, single buffered']
    #allocation3 [shape = 's32[1]{0}', space=sflag, size = 0x4, scoped, tag = 'scoped memory for tpu_custom_call.1']
    #allocation4 [shape = 's32[1]{0}', space=sflag, size = 0x4, scoped, tag = 'scoped memory for tpu_custom_call.1']
    #allocation5 [shape = 'u8[16384]{0}', space=vmem, size = 0x4000, scoped, tag = 'input window, operand 1, single buffered']
    #allocation6 [shape = 's32[1]{0}', space=sflag, size = 0x4, scoped, tag = 'scoped memory for tpu_custom_call.1']
    #allocation7 [shape = 'u8[65536]{0}', space=vmem, size = 0x10000, scoped, tag = 'input window, operand 3, single buffered']
    #allocation8 [shape = 'u8[65536]{0}', space=vmem, size = 0x10000, scoped, tag = 'input window, operand 5, single buffered']
    #allocation9 [shape = 's32[1]{0}', space=sflag, size = 0x4, scoped, tag = 'scoped memory for tpu_custom_call.1']
    #allocation10 [shape = 'u8[65536]{0}', space=vmem, size = 0x10000, scoped, tag = 'input window, operand 7, single buffered']
    #allocation11 [shape = 'u8[65536]{0}', space=vmem, size = 0x10000, scoped, tag = 'input window, operand 9, single buffered']
    #allocation12 [shape = 's32[1]{0}', space=sflag, size = 0x4, scoped, tag = 'scoped memory for tpu_custom_call.1']
    #allocation13 [shape = 'u8[4096]{0}', space=vmem, size = 0x1000, scoped, tag = 'output window, operand 0, single buffered']
    %16 = vsyncpa [#allocation3], 0
    %17 = vsyncpa [#allocation6], 0
    %18 = vsyncpa [#allocation9], 0
    %19 = vsyncpa [#allocation12], 0
    %20 = vsyncpa [#allocation4], 0
    // Predicated region
    $region2: #{tpu_custom_call.1} parent=1 // pred_check
      _
    $region3: #{tpu_custom_call.1} parent=1 // pred_check_branch
      %22 = sbr.rel (0) target = $region5
    $region4: #{tpu_custom_call.1} parent=1 // pred_region
      %s24 = ssub.s32 128, 128
      %25 = vsyncadd [#allocation3], %s24
      %s27 = sshll.u32 [#allocation2], 4
      %s28 = int_to_ptr.vmem [resolvable:$true] %s27
      %30 = dma.hbm_to_vmem [thread:$0]  %s0, 128, %s28, [#allocation3]
    $region5: #{tpu_custom_call.1} parent=1 // pred_fallthru
      _
    // Predicated region
    $region6: #{tpu_custom_call.1} parent=1 // pred_check
      _
    $region7: #{tpu_custom_call.1} parent=1 // pred_check_branch
      %32 = sbr.rel (0) target = $region9
    $region8: #{tpu_custom_call.1} parent=1 // pred_region
      %s34 = ssub.s32 512, 512
      %35 = vsyncadd [#allocation6], %s34
      %s36 = sshll.u32 [#allocation5], 4
      %s37 = int_to_ptr.vmem [resolvable:$true] %s36
      %42 = dma.hbm_to_vmem [thread:$0]  %s1, 512, %s37, [#allocation6], 128, 128, 8
    $region9: #{tpu_custom_call.1} parent=1 // pred_fallthru
      _
    // Predicated region
    $region10: #{tpu_custom_call.1} parent=1 // pred_check
      _
    $region11: #{tpu_custom_call.1} parent=1 // pred_check_branch
      %44 = sbr.rel (0) target = $region13
    $region12: #{tpu_custom_call.1} parent=1 // pred_region
      _
    $region13: #{tpu_custom_call.1} parent=1 // pred_fallthru
      _
    // Predicated region
    $region14: #{tpu_custom_call.1} parent=1 // pred_check
      _
    $region15: #{tpu_custom_call.1} parent=1 // pred_check_branch
      %46 = sbr.rel (0) target = $region17
    $region16: #{tpu_custom_call.1} parent=1 // pred_region
      %s48 = ssub.s32 2048, 2048
      %49 = vsyncadd [#allocation6], %s48
      %s50 = sshll.u32 [#allocation7], 4
      %s51 = int_to_ptr.vmem [resolvable:$true] %s50
      %56 = dma.hbm_to_vmem [thread:$0]  %s3, 2048, %s51, [#allocation6], 128, 128, 8
    $region17: #{tpu_custom_call.1} parent=1 // pred_fallthru
      _
    // Predicated region
    $region18: #{tpu_custom_call.1} parent=1 // pred_check
      _
    $region19: #{tpu_custom_call.1} parent=1 // pred_check_branch
      %58 = sbr.rel (0) target = $region21
    $region20: #{tpu_custom_call.1} parent=1 // pred_region
      _
    $region21: #{tpu_custom_call.1} parent=1 // pred_fallthru
      _
    // Predicated region
    $region22: #{tpu_custom_call.1} parent=1 // pred_check
      _
    $region23: #{tpu_custom_call.1} parent=1 // pred_check_branch
      %60 = sbr.rel (0) target = $region25
    $region24: #{tpu_custom_call.1} parent=1 // pred_region
      %s62 = ssub.s32 2048, 2048
      %63 = vsyncadd [#allocation9], %s62
      %s64 = sshll.u32 [#allocation8], 4
      %s65 = int_to_ptr.vmem [resolvable:$true] %s64
      %70 = dma.hbm_to_vmem [thread:$0]  %s5, 2048, %s65, [#allocation9], 128, 128, 8
    $region25: #{tpu_custom_call.1} parent=1 // pred_fallthru
      _
    // Predicated region
    $region26: #{tpu_custom_call.1} parent=1 // pred_check
      _
    $region27: #{tpu_custom_call.1} parent=1 // pred_check_branch
      %72 = sbr.rel (0) target = $region29
    $region28: #{tpu_custom_call.1} parent=1 // pred_region
      _
    $region29: #{tpu_custom_call.1} parent=1 // pred_fallthru
      _
    // Predicated region
    $region30: #{tpu_custom_call.1} parent=1 // pred_check
      _
    $region31: #{tpu_custom_call.1} parent=1 // pred_check_branch
      %74 = sbr.rel (0) target = $region33
    $region32: #{tpu_custom_call.1} parent=1 // pred_region
      %s76 = ssub.s32 2048, 2048
      %77 = vsyncadd [#allocation9], %s76
      %s78 = sshll.u32 [#allocation10], 4
      %s79 = int_to_ptr.vmem [resolvable:$true] %s78
      %84 = dma.hbm_to_vmem [thread:$0]  %s7, 2048, %s79, [#allocation9], 128, 128, 8
    $region33: #{tpu_custom_call.1} parent=1 // pred_fallthru
      _
    // Predicated region
    $region34: #{tpu_custom_call.1} parent=1 // pred_check
      _
    $region35: #{tpu_custom_call.1} parent=1 // pred_check_branch
      %86 = sbr.rel (0) target = $region37
    $region36: #{tpu_custom_call.1} parent=1 // pred_region
      _
    $region37: #{tpu_custom_call.1} parent=1 // pred_fallthru
      _
    // Predicated region
    $region38: #{tpu_custom_call.1} parent=1 // pred_check
      _
    $region39: #{tpu_custom_call.1} parent=1 // pred_check_branch
      %88 = sbr.rel (0) target = $region41
    $region40: #{tpu_custom_call.1} parent=1 // pred_region
      %s90 = ssub.s32 2048, 2048
      %91 = vsyncadd [#allocation12], %s90
      %s92 = sshll.u32 [#allocation11], 4
      %s93 = int_to_ptr.vmem [resolvable:$true] %s92
      %98 = dma.hbm_to_vmem [thread:$0]  %s9, 2048, %s93, [#allocation12], 128, 128, 8
    $region41: #{tpu_custom_call.1} parent=1 // pred_fallthru
      _
    // Predicated region
    $region42: #{tpu_custom_call.1} parent=1 // pred_check
      _
    $region43: #{tpu_custom_call.1} parent=1 // pred_check_branch
      %100 = sbr.rel (0) target = $region45
    $region44: #{tpu_custom_call.1} parent=1 // pred_region
      _
    $region45: #{tpu_custom_call.1} parent=1 // pred_fallthru
      _
    // Predicated region
    $region46: #{tpu_custom_call.1} parent=1 // pred_check
      _
    $region47: #{tpu_custom_call.1} parent=1 // pred_check_branch
      %102 = sbr.rel (0) target = $region49
    $region48: #{tpu_custom_call.1} parent=1 // pred_region
      %103 = dma.done [#allocation3], 128
    $region49: #{tpu_custom_call.1} parent=1 // pred_fallthru
      _
    // Predicated region
    $region50: #{tpu_custom_call.1} parent=1 // pred_check
      _
    $region51: #{tpu_custom_call.1} parent=1 // pred_check_branch
      %105 = sbr.rel (0) target = $region53
    $region52: #{tpu_custom_call.1} parent=1 // pred_region
      %106 = dma.done [#allocation6], 512
    $region53: #{tpu_custom_call.1} parent=1 // pred_fallthru
      _
    // Predicated region
    $region54: #{tpu_custom_call.1} parent=1 // pred_check
      _
    $region55: #{tpu_custom_call.1} parent=1 // pred_check_branch
      %108 = sbr.rel (0) target = $region57
    $region56: #{tpu_custom_call.1} parent=1 // pred_region
      %109 = dma.done [#allocation6], 2048
    $region57: #{tpu_custom_call.1} parent=1 // pred_fallthru
      _
    // Predicated region
    $region58: #{tpu_custom_call.1} parent=1 // pred_check
      _
    $region59: #{tpu_custom_call.1} parent=1 // pred_check_branch
      %111 = sbr.rel (0) target = $region61
    $region60: #{tpu_custom_call.1} parent=1 // pred_region
      %112 = dma.done [#allocation9], 2048
    $region61: #{tpu_custom_call.1} parent=1 // pred_fallthru
      _
    // Predicated region
    $region62: #{tpu_custom_call.1} parent=1 // pred_check
      _
    $region63: #{tpu_custom_call.1} parent=1 // pred_check_branch
      %114 = sbr.rel (0) target = $region65
    $region64: #{tpu_custom_call.1} parent=1 // pred_region
      %115 = dma.done [#allocation9], 2048
    $region65: #{tpu_custom_call.1} parent=1 // pred_fallthru
      _
    // Predicated region
    $region66: #{tpu_custom_call.1} parent=1 // pred_check
      _
    $region67: #{tpu_custom_call.1} parent=1 // pred_check_branch
      %117 = sbr.rel (0) target = $region69
    $region68: #{tpu_custom_call.1} parent=1 // pred_region
      %118 = dma.done [#allocation12], 2048
    $region69: #{tpu_custom_call.1} parent=1 // pred_fallthru
      _
    %v119 = vld [vmem:[#allocation2] sm:$0xff]
    %v120 = vld [vmem:[#allocation5] sm:$0xff]
    %v121 = vld [vmem:[#allocation5 + $0x8] sm:$0xff]
    %v122 = vld [vmem:[#allocation5 + $0x10] sm:$0xff]
    %v123 = vld [vmem:[#allocation5 + $0x18] sm:$0xff]
    %v124 = vld [vmem:[%s2] sm:$0x1]
    %v126 = vlaneseq
    %v127 = vshrl.u32 %v126, 7
    %v128 = vsub.s32 0, %v127
    %v129 = vrot.slane %v124, %v128
    %vm131 = vcmask 261120
    %v133 = vsel %vm131, %v119, 0
    %135 = vmatprep.subr.mxu0 0.0
    %136 = vmatpush1.msra.mxu0 %v120
    %137 = vmatprep.subr.mxu0 0.0
    %138 = vmatpush1.msra.mxu0 %v121
    %139 = vmatprep.subr.mxu0 0.0
    %140 = vmatpush1.msra.mxu0 %v122
    %141 = vmatprep.subr.mxu0 0.0
    %142 = vmatpush1.msra.mxu0 %v123
    %143 = vmatprep.subr.mxu0 0.0
    %144 = vmatpush1.msra.mxu0 0.0
    %145 = vmatprep.subr.mxu0 0.0
    %146 = vmatpush1.msra.mxu0 0.0
    %147 = vmatprep.subr.mxu0 0.0
    %148 = vmatpush1.msra.mxu0 0.0
    %149 = vmatprep.subr.mxu0 0.0
    %150 = vmatpush1.msra.mxu0 0.0
    %151 = vmatprep.subr.mxu0 0.0
    %152 = vmatpush1.msra.mxu0 0.0
    %153 = vmatprep.subr.mxu0 0.0
    %154 = vmatpush1.msra.mxu0 0.0
    %155 = vmatprep.subr.mxu0 0.0
    %156 = vmatpush1.msra.mxu0 0.0
    %157 = vmatprep.subr.mxu0 0.0
    %158 = vmatpush1.msra.mxu0 0.0
    %159 = vmatprep.subr.mxu0 0.0
    %160 = vmatpush1.msra.mxu0 0.0
    %161 = vmatprep.subr.mxu0 0.0
    %162 = vmatpush1.msra.mxu0 0.0
    %163 = vmatprep.subr.mxu0 0.0
    %164 = vmatpush1.msra.mxu0 0.0
    %165 = vmatprep.subr.mxu0 0.0
    %166 = vmatpush1.msra.mxu0 0.0
    %167 = vmatprep.subr.mxu0 0.0
    %168 = vmatpush1.msra.mxu0 0.0
    %169 = vmatprep.subr.mxu0 0.0
    %170 = vmatpush1.msra.mxu0 0.0
    %171 = vmatprep.subr.mxu0 0.0
    %172 = vmatpush1.msra.mxu0 0.0
    %173 = vmatprep.subr.mxu0 0.0
    %174 = vmatpush1.msra.mxu0 0.0
    %175 = vmatprep.subr.mxu0 0.0
    %176 = vmatpush1.msra.mxu0 0.0
    %177 = vmatprep.subr.mxu0 0.0
    %178 = vmatpush1.msra.mxu0 0.0
    %179 = vmatprep.subr.mxu0 0.0
    %180 = vmatpush1.msra.mxu0 0.0
    %181 = vmatprep.subr.mxu0 0.0
    %182 = vmatpush1.msra.mxu0 0.0
    %183 = vmatprep.subr.mxu0 0.0
    %184 = vmatpush1.msra.mxu0 0.0
    %185 = vmatprep.subr.mxu0 0.0
    %186 = vmatpush1.msra.mxu0 0.0
    %187 = vmatprep.subr.mxu0 0.0
    %188 = vmatpush1.msra.mxu0 0.0
    %189 = vmatprep.subr.mxu0 0.0
    %190 = vmatpush1.msra.mxu0 0.0
    %191 = vmatprep.subr.mxu0 0.0
    %192 = vmatpush1.msra.mxu0 0.0
    %193 = vmatprep.subr.mxu0 0.0
    %194 = vmatpush1.msra.mxu0 0.0
    %195 = vmatprep.subr.mxu0 0.0
    %196 = vmatpush1.msra.mxu0 0.0
    %197 = vmatprep.subr.mxu0 0.0
    %198 = vmatpush1.msra.mxu0 0.0
    %199 = vmatprep.mubr.f32.mxu0 0.0
    %200 = vmatmul.mubr.f32.gmra.mrb[0].mxu0 %v133
    %v201 = vpop.f32.mrb[0].mxu0
    %v202 = vadd.f32 %v129, %v201
    %v203 = vpop.f32.mrb[0].mxu0
    %204 = vdwg.mxu0
    %v205 = vmax.f32 %v202, 0.0
    %v206 = vld [vmem:[#allocation7] sm:$0xff]
    %v207 = vld [vmem:[#allocation7 + $0x8] sm:$0xff]
    %v208 = vld [vmem:[#allocation7 + $0x10] sm:$0xff]
    %v209 = vld [vmem:[#allocation7 + $0x18] sm:$0xff]
    %v210 = vld [vmem:[#allocation7 + $0x20] sm:$0xff]
    %v211 = vld [vmem:[#allocation7 + $0x28] sm:$0xff]
    %v212 = vld [vmem:[#allocation7 + $0x30] sm:$0xff]
    %v213 = vld [vmem:[#allocation7 + $0x38] sm:$0xff]
    %v214 = vld [vmem:[#allocation7 + $0x40] sm:$0xff]
    %v215 = vld [vmem:[#allocation7 + $0x48] sm:$0xff]
    %v216 = vld [vmem:[#allocation7 + $0x50] sm:$0xff]
    %v217 = vld [vmem:[#allocation7 + $0x58] sm:$0xff]
    %v218 = vld [vmem:[#allocation7 + $0x60] sm:$0xff]
    %v219 = vld [vmem:[#allocation7 + $0x68] sm:$0xff]
    %v220 = vld [vmem:[#allocation7 + $0x70] sm:$0xff]
    %v221 = vld [vmem:[#allocation7 + $0x78] sm:$0xff]
    %v222 = vld [vmem:[%s4] sm:$0x1]
    %v224 = vlaneseq
    %v225 = vshrl.u32 %v224, 7
    %v226 = vsub.s32 0, %v225
    %v227 = vrot.slane %v222, %v226
    %229 = vmatprep.subr.mxu0 0.0
    %230 = vmatpush1.msra.mxu0 %v206
    %231 = vmatprep.subr.mxu0 0.0
    %232 = vmatpush1.msra.mxu0 %v207
    %233 = vmatprep.subr.mxu0 0.0
    %234 = vmatpush1.msra.mxu0 %v208
    %235 = vmatprep.subr.mxu0 0.0
    %236 = vmatpush1.msra.mxu0 %v209
    %237 = vmatprep.subr.mxu0 0.0
    %238 = vmatpush1.msra.mxu0 %v210
    %239 = vmatprep.subr.mxu0 0.0
    %240 = vmatpush1.msra.mxu0 %v211
    %241 = vmatprep.subr.mxu0 0.0
    %242 = vmatpush1.msra.mxu0 %v212
    %243 = vmatprep.subr.mxu0 0.0
    %244 = vmatpush1.msra.mxu0 %v213
    %245 = vmatprep.subr.mxu0 0.0
    %246 = vmatpush1.msra.mxu0 %v214
    %247 = vmatprep.subr.mxu0 0.0
    %248 = vmatpush1.msra.mxu0 %v215
    %249 = vmatprep.subr.mxu0 0.0
    %250 = vmatpush1.msra.mxu0 %v216
    %251 = vmatprep.subr.mxu0 0.0
    %252 = vmatpush1.msra.mxu0 %v217
    %253 = vmatprep.subr.mxu0 0.0
    %254 = vmatpush1.msra.mxu0 %v218
    %255 = vmatprep.subr.mxu0 0.0
    %256 = vmatpush1.msra.mxu0 %v219
    %257 = vmatprep.subr.mxu0 0.0
    %258 = vmatpush1.msra.mxu0 %v220
    %259 = vmatprep.subr.mxu0 0.0
    %260 = vmatpush1.msra.mxu0 %v221
    %261 = vmatprep.subr.mxu0 0.0
    %262 = vmatpush1.msra.mxu0 0.0
    %263 = vmatprep.subr.mxu0 0.0
    %264 = vmatpush1.msra.mxu0 0.0
    %265 = vmatprep.subr.mxu0 0.0
    %266 = vmatpush1.msra.mxu0 0.0
    %267 = vmatprep.subr.mxu0 0.0
    %268 = vmatpush1.msra.mxu0 0.0
    %269 = vmatprep.subr.mxu0 0.0
    %270 = vmatpush1.msra.mxu0 0.0
    %271 = vmatprep.subr.mxu0 0.0
    %272 = vmatpush1.msra.mxu0 0.0
    %273 = vmatprep.subr.mxu0 0.0
    %274 = vmatpush1.msra.mxu0 0.0
    %275 = vmatprep.subr.mxu0 0.0
    %276 = vmatpush1.msra.mxu0 0.0
    %277 = vmatprep.subr.mxu0 0.0
    %278 = vmatpush1.msra.mxu0 0.0
    %279 = vmatprep.subr.mxu0 0.0
    %280 = vmatpush1.msra.mxu0 0.0
    %281 = vmatprep.subr.mxu0 0.0
    %282 = vmatpush1.msra.mxu0 0.0
    %283 = vmatprep.subr.mxu0 0.0
    %284 = vmatpush1.msra.mxu0 0.0
    %285 = vmatprep.subr.mxu0 0.0
    %286 = vmatpush1.msra.mxu0 0.0
    %287 = vmatprep.subr.mxu0 0.0
    %288 = vmatpush1.msra.mxu0 0.0
    %289 = vmatprep.subr.mxu0 0.0
    %290 = vmatpush1.msra.mxu0 0.0
    %291 = vmatprep.subr.mxu0 0.0
    %292 = vmatpush1.msra.mxu0 0.0
    %293 = vmatprep.mubr.f32.mxu0 0.0
    %294 = vmatmul.mubr.f32.gmra.mrb[0].mxu0 %v205
    %v295 = vpop.f32.mrb[0].mxu0
    %v296 = vadd.f32 %v227, %v295
    %v297 = vpop.f32.mrb[0].mxu0
    %298 = vdwg.mxu0
    %v299 = vmax.f32 %v296, 0.0
    %v300 = vld [vmem:[#allocation8] sm:$0xff]
    %v301 = vld [vmem:[#allocation8 + $0x8] sm:$0xff]
    %v302 = vld [vmem:[#allocation8 + $0x10] sm:$0xff]
    %v303 = vld [vmem:[#allocation8 + $0x18] sm:$0xff]
    %v304 = vld [vmem:[#allocation8 + $0x20] sm:$0xff]
    %v305 = vld [vmem:[#allocation8 + $0x28] sm:$0xff]
    %v306 = vld [vmem:[#allocation8 + $0x30] sm:$0xff]
    %v307 = vld [vmem:[#allocation8 + $0x38] sm:$0xff]
    %v308 = vld [vmem:[#allocation8 + $0x40] sm:$0xff]
    %v309 = vld [vmem:[#allocation8 + $0x48] sm:$0xff]
    %v310 = vld [vmem:[#allocation8 + $0x50] sm:$0xff]
    %v311 = vld [vmem:[#allocation8 + $0x58] sm:$0xff]
    %v312 = vld [vmem:[#allocation8 + $0x60] sm:$0xff]
    %v313 = vld [vmem:[#allocation8 + $0x68] sm:$0xff]
    %v314 = vld [vmem:[#allocation8 + $0x70] sm:$0xff]
    %v315 = vld [vmem:[#allocation8 + $0x78] sm:$0xff]
    %v316 = vld [vmem:[%s6] sm:$0x1]
    %v318 = vlaneseq
    %v319 = vshrl.u32 %v318, 7
    %v320 = vsub.s32 0, %v319
    %v321 = vrot.slane %v316, %v320
    %323 = vmatprep.subr.mxu0 0.0
    %324 = vmatpush1.msra.mxu0 %v300
    %325 = vmatprep.subr.mxu0 0.0
    %326 = vmatpush1.msra.mxu0 %v301
    %327 = vmatprep.subr.mxu0 0.0
    %328 = vmatpush1.msra.mxu0 %v302
    %329 = vmatprep.subr.mxu0 0.0
    %330 = vmatpush1.msra.mxu0 %v303
    %331 = vmatprep.subr.mxu0 0.0
    %332 = vmatpush1.msra.mxu0 %v304
    %333 = vmatprep.subr.mxu0 0.0
    %334 = vmatpush1.msra.mxu0 %v305
    %335 = vmatprep.subr.mxu0 0.0
    %336 = vmatpush1.msra.mxu0 %v306
    %337 = vmatprep.subr.mxu0 0.0
    %338 = vmatpush1.msra.mxu0 %v307
    %339 = vmatprep.subr.mxu0 0.0
    %340 = vmatpush1.msra.mxu0 %v308
    %341 = vmatprep.subr.mxu0 0.0
    %342 = vmatpush1.msra.mxu0 %v309
    %343 = vmatprep.subr.mxu0 0.0
    %344 = vmatpush1.msra.mxu0 %v310
    %345 = vmatprep.subr.mxu0 0.0
    %346 = vmatpush1.msra.mxu0 %v311
    %347 = vmatprep.subr.mxu0 0.0
    %348 = vmatpush1.msra.mxu0 %v312
    %349 = vmatprep.subr.mxu0 0.0
    %350 = vmatpush1.msra.mxu0 %v313
    %351 = vmatprep.subr.mxu0 0.0
    %352 = vmatpush1.msra.mxu0 %v314
    %353 = vmatprep.subr.mxu0 0.0
    %354 = vmatpush1.msra.mxu0 %v315
    %355 = vmatprep.subr.mxu0 0.0
    %356 = vmatpush1.msra.mxu0 0.0
    %357 = vmatprep.subr.mxu0 0.0
    %358 = vmatpush1.msra.mxu0 0.0
    %359 = vmatprep.subr.mxu0 0.0
    %360 = vmatpush1.msra.mxu0 0.0
    %361 = vmatprep.subr.mxu0 0.0
    %362 = vmatpush1.msra.mxu0 0.0
    %363 = vmatprep.subr.mxu0 0.0
    %364 = vmatpush1.msra.mxu0 0.0
    %365 = vmatprep.subr.mxu0 0.0
    %366 = vmatpush1.msra.mxu0 0.0
    %367 = vmatprep.subr.mxu0 0.0
    %368 = vmatpush1.msra.mxu0 0.0
    %369 = vmatprep.subr.mxu0 0.0
    %370 = vmatpush1.msra.mxu0 0.0
    %371 = vmatprep.subr.mxu0 0.0
    %372 = vmatpush1.msra.mxu0 0.0
    %373 = vmatprep.subr.mxu0 0.0
    %374 = vmatpush1.msra.mxu0 0.0
    %375 = vmatprep.subr.mxu0 0.0
    %376 = vmatpush1.msra.mxu0 0.0
    %377 = vmatprep.subr.mxu0 0.0
    %378 = vmatpush1.msra.mxu0 0.0
    %379 = vmatprep.subr.mxu0 0.0
    %380 = vmatpush1.msra.mxu0 0.0
    %381 = vmatprep.subr.mxu0 0.0
    %382 = vmatpush1.msra.mxu0 0.0
    %383 = vmatprep.subr.mxu0 0.0
    %384 = vmatpush1.msra.mxu0 0.0
    %385 = vmatprep.subr.mxu0 0.0
    %386 = vmatpush1.msra.mxu0 0.0
    %387 = vmatprep.mubr.f32.mxu0 0.0
    %388 = vmatmul.mubr.f32.gmra.mrb[0].mxu0 %v299
    %v389 = vpop.f32.mrb[0].mxu0
    %v390 = vadd.f32 %v321, %v389
    %v391 = vpop.f32.mrb[0].mxu0
    %392 = vdwg.mxu0
    %v393 = vmax.f32 %v390, 0.0
    %v394 = vld [vmem:[#allocation10] sm:$0xff]
    %v395 = vld [vmem:[#allocation10 + $0x8] sm:$0xff]
    %v396 = vld [vmem:[#allocation10 + $0x10] sm:$0xff]
    %v397 = vld [vmem:[#allocation10 + $0x18] sm:$0xff]
    %v398 = vld [vmem:[#allocation10 + $0x20] sm:$0xff]
    %v399 = vld [vmem:[#allocation10 + $0x28] sm:$0xff]
    %v400 = vld [vmem:[#allocation10 + $0x30] sm:$0xff]
    %v401 = vld [vmem:[#allocation10 + $0x38] sm:$0xff]
    %v402 = vld [vmem:[#allocation10 + $0x40] sm:$0xff]
    %v403 = vld [vmem:[#allocation10 + $0x48] sm:$0xff]
    %v404 = vld [vmem:[#allocation10 + $0x50] sm:$0xff]
    %v405 = vld [vmem:[#allocation10 + $0x58] sm:$0xff]
    %v406 = vld [vmem:[#allocation10 + $0x60] sm:$0xff]
    %v407 = vld [vmem:[#allocation10 + $0x68] sm:$0xff]
    %v408 = vld [vmem:[#allocation10 + $0x70] sm:$0xff]
    %v409 = vld [vmem:[#allocation10 + $0x78] sm:$0xff]
    %v410 = vld [vmem:[%s8] sm:$0x1]
    %v412 = vlaneseq
    %v413 = vshrl.u32 %v412, 7
    %v414 = vsub.s32 0, %v413
    %v415 = vrot.slane %v410, %v414
    %417 = vmatprep.subr.mxu0 0.0
    %418 = vmatpush1.msra.mxu0 %v394
    %419 = vmatprep.subr.mxu0 0.0
    %420 = vmatpush1.msra.mxu0 %v395
    %421 = vmatprep.subr.mxu0 0.0
    %422 = vmatpush1.msra.mxu0 %v396
    %423 = vmatprep.subr.mxu0 0.0
    %424 = vmatpush1.msra.mxu0 %v397
    %425 = vmatprep.subr.mxu0 0.0
    %426 = vmatpush1.msra.mxu0 %v398
    %427 = vmatprep.subr.mxu0 0.0
    %428 = vmatpush1.msra.mxu0 %v399
    %429 = vmatprep.subr.mxu0 0.0
    %430 = vmatpush1.msra.mxu0 %v400
    %431 = vmatprep.subr.mxu0 0.0
    %432 = vmatpush1.msra.mxu0 %v401
    %433 = vmatprep.subr.mxu0 0.0
    %434 = vmatpush1.msra.mxu0 %v402
    %435 = vmatprep.subr.mxu0 0.0
    %436 = vmatpush1.msra.mxu0 %v403
    %437 = vmatprep.subr.mxu0 0.0
    %438 = vmatpush1.msra.mxu0 %v404
    %439 = vmatprep.subr.mxu0 0.0
    %440 = vmatpush1.msra.mxu0 %v405
    %441 = vmatprep.subr.mxu0 0.0
    %442 = vmatpush1.msra.mxu0 %v406
    %443 = vmatprep.subr.mxu0 0.0
    %444 = vmatpush1.msra.mxu0 %v407
    %445 = vmatprep.subr.mxu0 0.0
    %446 = vmatpush1.msra.mxu0 %v408
    %447 = vmatprep.subr.mxu0 0.0
    %448 = vmatpush1.msra.mxu0 %v409
    %449 = vmatprep.subr.mxu0 0.0
    %450 = vmatpush1.msra.mxu0 0.0
    %451 = vmatprep.subr.mxu0 0.0
    %452 = vmatpush1.msra.mxu0 0.0
    %453 = vmatprep.subr.mxu0 0.0
    %454 = vmatpush1.msra.mxu0 0.0
    %455 = vmatprep.subr.mxu0 0.0
    %456 = vmatpush1.msra.mxu0 0.0
    %457 = vmatprep.subr.mxu0 0.0
    %458 = vmatpush1.msra.mxu0 0.0
    %459 = vmatprep.subr.mxu0 0.0
    %460 = vmatpush1.msra.mxu0 0.0
    %461 = vmatprep.subr.mxu0 0.0
    %462 = vmatpush1.msra.mxu0 0.0
    %463 = vmatprep.subr.mxu0 0.0
    %464 = vmatpush1.msra.mxu0 0.0
    %465 = vmatprep.subr.mxu0 0.0
    %466 = vmatpush1.msra.mxu0 0.0
    %467 = vmatprep.subr.mxu0 0.0
    %468 = vmatpush1.msra.mxu0 0.0
    %469 = vmatprep.subr.mxu0 0.0
    %470 = vmatpush1.msra.mxu0 0.0
    %471 = vmatprep.subr.mxu0 0.0
    %472 = vmatpush1.msra.mxu0 0.0
    %473 = vmatprep.subr.mxu0 0.0
    %474 = vmatpush1.msra.mxu0 0.0
    %475 = vmatprep.subr.mxu0 0.0
    %476 = vmatpush1.msra.mxu0 0.0
    %477 = vmatprep.subr.mxu0 0.0
    %478 = vmatpush1.msra.mxu0 0.0
    %479 = vmatprep.subr.mxu0 0.0
    %480 = vmatpush1.msra.mxu0 0.0
    %481 = vmatprep.mubr.f32.mxu0 0.0
    %482 = vmatmul.mubr.f32.gmra.mrb[0].mxu0 %v393
    %v483 = vpop.f32.mrb[0].mxu0
    %v484 = vadd.f32 %v415, %v483
    %v485 = vpop.f32.mrb[0].mxu0
    %486 = vdwg.mxu0
    %v487 = vmax.f32 %v484, 0.0
    %v488 = vld [vmem:[#allocation11] sm:$0xff]
    %v489 = vld [vmem:[#allocation11 + $0x8] sm:$0xff]
    %v490 = vld [vmem:[#allocation11 + $0x10] sm:$0xff]
    %v491 = vld [vmem:[#allocation11 + $0x18] sm:$0xff]
    %v492 = vld [vmem:[#allocation11 + $0x20] sm:$0xff]
    %v493 = vld [vmem:[#allocation11 + $0x28] sm:$0xff]
    %v494 = vld [vmem:[#allocation11 + $0x30] sm:$0xff]
    %v495 = vld [vmem:[#allocation11 + $0x38] sm:$0xff]
    %v496 = vld [vmem:[#allocation11 + $0x40] sm:$0xff]
    %v497 = vld [vmem:[#allocation11 + $0x48] sm:$0xff]
    %v498 = vld [vmem:[#allocation11 + $0x50] sm:$0xff]
    %v499 = vld [vmem:[#allocation11 + $0x58] sm:$0xff]
    %v500 = vld [vmem:[#allocation11 + $0x60] sm:$0xff]
    %v501 = vld [vmem:[#allocation11 + $0x68] sm:$0xff]
    %v502 = vld [vmem:[#allocation11 + $0x70] sm:$0xff]
    %v503 = vld [vmem:[#allocation11 + $0x78] sm:$0xff]
    %v504 = vld [vmem:[%s10] sm:$0x1]
    %v506 = vlaneseq
    %v507 = vshrl.u32 %v506, 7
    %v508 = vsub.s32 0, %v507
    %v509 = vrot.slane %v504, %v508
    %511 = vmatprep.subr.mxu0 0.0
    %512 = vmatpush1.msra.mxu0 %v488
    %513 = vmatprep.subr.mxu0 0.0
    %514 = vmatpush1.msra.mxu0 %v489
    %515 = vmatprep.subr.mxu0 0.0
    %516 = vmatpush1.msra.mxu0 %v490
    %517 = vmatprep.subr.mxu0 0.0
    %518 = vmatpush1.msra.mxu0 %v491
    %519 = vmatprep.subr.mxu0 0.0
    %520 = vmatpush1.msra.mxu0 %v492
    %521 = vmatprep.subr.mxu0 0.0
    %522 = vmatpush1.msra.mxu0 %v493
    %523 = vmatprep.subr.mxu0 0.0
    %524 = vmatpush1.msra.mxu0 %v494
    %525 = vmatprep.subr.mxu0 0.0
    %526 = vmatpush1.msra.mxu0 %v495
    %527 = vmatprep.subr.mxu0 0.0
    %528 = vmatpush1.msra.mxu0 %v496
    %529 = vmatprep.subr.mxu0 0.0
    %530 = vmatpush1.msra.mxu0 %v497
    %531 = vmatprep.subr.mxu0 0.0
    %532 = vmatpush1.msra.mxu0 %v498
    %533 = vmatprep.subr.mxu0 0.0
    %534 = vmatpush1.msra.mxu0 %v499
    %535 = vmatprep.subr.mxu0 0.0
    %536 = vmatpush1.msra.mxu0 %v500
    %537 = vmatprep.subr.mxu0 0.0
    %538 = vmatpush1.msra.mxu0 %v501
    %539 = vmatprep.subr.mxu0 0.0
    %540 = vmatpush1.msra.mxu0 %v502
    %541 = vmatprep.subr.mxu0 0.0
    %542 = vmatpush1.msra.mxu0 %v503
    %543 = vmatprep.subr.mxu0 0.0
    %544 = vmatpush1.msra.mxu0 0.0
    %545 = vmatprep.subr.mxu0 0.0
    %546 = vmatpush1.msra.mxu0 0.0
    %547 = vmatprep.subr.mxu0 0.0
    %548 = vmatpush1.msra.mxu0 0.0
    %549 = vmatprep.subr.mxu0 0.0
    %550 = vmatpush1.msra.mxu0 0.0
    %551 = vmatprep.subr.mxu0 0.0
    %552 = vmatpush1.msra.mxu0 0.0
    %553 = vmatprep.subr.mxu0 0.0
    %554 = vmatpush1.msra.mxu0 0.0
    %555 = vmatprep.subr.mxu0 0.0
    %556 = vmatpush1.msra.mxu0 0.0
    %557 = vmatprep.subr.mxu0 0.0
    %558 = vmatpush1.msra.mxu0 0.0
    %559 = vmatprep.subr.mxu0 0.0
    %560 = vmatpush1.msra.mxu0 0.0
    %561 = vmatprep.subr.mxu0 0.0
    %562 = vmatpush1.msra.mxu0 0.0
    %563 = vmatprep.subr.mxu0 0.0
    %564 = vmatpush1.msra.mxu0 0.0
    %565 = vmatprep.subr.mxu0 0.0
    %566 = vmatpush1.msra.mxu0 0.0
    %567 = vmatprep.subr.mxu0 0.0
    %568 = vmatpush1.msra.mxu0 0.0
    %569 = vmatprep.subr.mxu0 0.0
    %570 = vmatpush1.msra.mxu0 0.0
    %571 = vmatprep.subr.mxu0 0.0
    %572 = vmatpush1.msra.mxu0 0.0
    %573 = vmatprep.subr.mxu0 0.0
    %574 = vmatpush1.msra.mxu0 0.0
    %575 = vmatprep.mubr.f32.mxu0 0.0
    %576 = vmatmul.mubr.f32.gmra.mrb[0].mxu0 %v487
    %v577 = vpop.f32.mrb[0].mxu0
    %v578 = vadd.f32 %v509, %v577
    %v579 = vpop.f32.mrb[0].mxu0
    %580 = vdwg.mxu0
    %581 = vst [vmem:[#allocation13] sm:$0xff] %v578
    // Predicated region
    $region70: #{tpu_custom_call.1} parent=1 // pred_check
      _
    $region71: #{tpu_custom_call.1} parent=1 // pred_check_branch
      %583 = sbr.rel (0) target = $region73
    $region72: #{tpu_custom_call.1} parent=1 // pred_region
      %s585 = ssub.s32 128, 128
      %586 = vsyncadd [#allocation4], %s585
      %s588 = sshll.u32 [#allocation13], 4
      %s589 = int_to_ptr.vmem [resolvable:$true] %s588
      %591 = dma.vmem_to_hbm [thread:$0]  %s589, 128, %s11, [#allocation4]
    $region73: #{tpu_custom_call.1} parent=1 // pred_fallthru
      _
    // Predicated region
    $region74: #{tpu_custom_call.1} parent=1 // pred_check
      _
    $region75: #{tpu_custom_call.1} parent=1 // pred_check_branch
      %593 = sbr.rel (0) target = $region77
    $region76: #{tpu_custom_call.1} parent=1 // pred_region
      %594 = dma.done [#allocation4], 128
    $region77: #{tpu_custom_call.1} parent=1 // pred_fallthru
      _
    %595 = vsyncpa [#allocation3], 1
    %596 = vsyncpa [#allocation6], 1
    %597 = vsyncpa [#allocation9], 1
    %598 = vsyncpa [#allocation12], 1
    %599 = vsyncpa [#allocation4], 1

// kernel: tpu_custom_call.1
$region0: #{tpu_custom_call.1}
  #allocation0 [shape = 'u32[]', space=smem, size = 0x4, offset = 0x4, fixed_abs, tag = 'smem constant byte address 0x4 - core index']
  #allocation1 [shape = 'u32[144,128]{1,0:T(1,128)}', space=vmem, size = 0x12000, scoped, tag = 'internal scratch']
  %s0 = inlined_call_operand.hbm [shape: f32[8,32], index: 0, kind: input, shape index: {}]
  %s1 = inlined_call_operand.hbm [shape: f32[32,128], index: 1, kind: input, shape index: {}]
  %s2 = inlined_call_operand.vmem [shape: f32[1,128], index: 2, kind: input, shape index: {}]
  %s3 = inlined_call_operand.hbm [shape: f32[128,128], index: 3, kind: input, shape index: {}]
  %s4 = inlined_call_operand.vmem [shape: f32[1,128], index: 4, kind: input, shape index: {}]
  %s5 = inlined_call_operand.hbm [shape: f32[128,128], index: 5, kind: input, shape index: {}]
  %s6 = inlined_call_operand.vmem [shape: f32[1,128], index: 6, kind: input, shape index: {}]
  %s7 = inlined_call_operand.hbm [shape: f32[128,128], index: 7, kind: input, shape index: {}]
  %s8 = inlined_call_operand.vmem [shape: f32[1,128], index: 8, kind: input, shape index: {}]
  %s9 = inlined_call_operand.hbm [shape: f32[128,128], index: 9, kind: input, shape index: {}]
  %s10 = inlined_call_operand.vmem [shape: f32[1,128], index: 10, kind: input, shape index: {}]
  %s11 = inlined_call_operand.hbm [shape: f32[8,128], index: 11, kind: output, shape index: {}]
  %s12 = sld [smem:[#allocation0]]
  $region78: #{tpu_custom_call.1} parent=0
    _
  %s14 = ssub.s32 1, %s12
  %s15 = scalar_select 0, %s14, %s12
  $region1: #{tpu_custom_call.1} parent=0
    #allocation2 [shape = 'u8[4096]{0}', space=vmem, size = 0x1000, scoped, tag = 'input window, operand 0, single buffered']
    #allocation3 [shape = 's32[1]{0}', space=sflag, size = 0x4, scoped, tag = 'scoped memory for tpu_custom_call.1']
    #allocation4 [shape = 's32[1]{0}', space=sflag, size = 0x4, scoped, tag = 'scoped memory for tpu_custom_call.1']
    #allocation5 [shape = 'u8[16384]{0}', space=vmem, size = 0x4000, scoped, tag = 'input window, operand 1, single buffered']
    #allocation6 [shape = 's32[1]{0}', space=sflag, size = 0x4, scoped, tag = 'scoped memory for tpu_custom_call.1']
    #allocation7 [shape = 'u8[65536]{0}', space=vmem, size = 0x10000, scoped, tag = 'input window, operand 3, single buffered']
    #allocation8 [shape = 'u8[65536]{0}', space=vmem, size = 0x10000, scoped, tag = 'input window, operand 5, single buffered']
    #allocation9 [shape = 's32[1]{0}', space=sflag, size = 0x4, scoped, tag = 'scoped memory for tpu_custom_call.1']
    #allocation10 [shape = 'u8[65536]{0}', space=vmem, size = 0x10000, scoped, tag = 'input window, operand 7, single buffered']
    #allocation11 [shape = 'u8[65536]{0}', space=vmem, size = 0x10000, scoped, tag = 'input window, operand 9, single buffered']
    #allocation12 [shape = 's32[1]{0}', space=sflag, size = 0x4, scoped, tag = 'scoped memory for tpu_custom_call.1']
    #allocation13 [shape = 'u8[4096]{0}', space=vmem, size = 0x1000, scoped, tag = 'output window, operand 0, single buffered']
    %16 = vsyncpa [#allocation3], 0
    %17 = vsyncpa [#allocation6], 0
    %18 = vsyncpa [#allocation9], 0
    %19 = vsyncpa [#allocation12], 0
    %20 = vsyncpa [#allocation4], 0
    // Predicated region
    $region2: #{tpu_custom_call.1} parent=1 // pred_check
      _
    $region3: #{tpu_custom_call.1} parent=1 // pred_check_branch
      %22 = sbr.rel (0) target = $region5
    $region4: #{tpu_custom_call.1} parent=1 // pred_region
      %s24 = ssub.s32 128, 128
      %25 = vsyncadd [#allocation3], %s24
      %s27 = sshll.u32 [#allocation2], 4
      %s28 = int_to_ptr.vmem [resolvable:$true] %s27
      %30 = dma.hbm_to_vmem [thread:$0]  %s0, 128, %s28, [#allocation3]
    $region5: #{tpu_custom_call.1} parent=1 // pred_fallthru
      _
    // Predicated region
    $region6: #{tpu_custom_call.1} parent=1 // pred_check
      _
    $region7: #{tpu_custom_call.1} parent=1 // pred_check_branch
      %32 = sbr.rel (0) target = $region9
    $region8: #{tpu_custom_call.1} parent=1 // pred_region
      %s34 = ssub.s32 512, 512
      %35 = vsyncadd [#allocation6], %s34
      %s36 = sshll.u32 [#allocation5], 4
      %s37 = int_to_ptr.vmem [resolvable:$true] %s36
      %42 = dma.hbm_to_vmem [thread:$0]  %s1, 512, %s37, [#allocation6], 128, 128, 8
    $region9: #{tpu_custom_call.1} parent=1 // pred_fallthru
      _
    // Predicated region
    $region10: #{tpu_custom_call.1} parent=1 // pred_check
      _
    $region11: #{tpu_custom_call.1} parent=1 // pred_check_branch
      %44 = sbr.rel (0) target = $region13
    $region12: #{tpu_custom_call.1} parent=1 // pred_region
      _
    $region13: #{tpu_custom_call.1} parent=1 // pred_fallthru
      _
    // Predicated region
    $region14: #{tpu_custom_call.1} parent=1 // pred_check
      _
    $region15: #{tpu_custom_call.1} parent=1 // pred_check_branch
      %46 = sbr.rel (0) target = $region17
    $region16: #{tpu_custom_call.1} parent=1 // pred_region
      %s48 = ssub.s32 2048, 2048
      %49 = vsyncadd [#allocation6], %s48
      %s50 = sshll.u32 [#allocation7], 4
      %s51 = int_to_ptr.vmem [resolvable:$true] %s50
      %56 = dma.hbm_to_vmem [thread:$0]  %s3, 2048, %s51, [#allocation6], 128, 128, 8
    $region17: #{tpu_custom_call.1} parent=1 // pred_fallthru
      _
    // Predicated region
    $region18: #{tpu_custom_call.1} parent=1 // pred_check
      _
    $region19: #{tpu_custom_call.1} parent=1 // pred_check_branch
      %58 = sbr.rel (0) target = $region21
    $region20: #{tpu_custom_call.1} parent=1 // pred_region
      _
    $region21: #{tpu_custom_call.1} parent=1 // pred_fallthru
      _
    // Predicated region
    $region22: #{tpu_custom_call.1} parent=1 // pred_check
      _
    $region23: #{tpu_custom_call.1} parent=1 // pred_check_branch
      %60 = sbr.rel (0) target = $region25
    $region24: #{tpu_custom_call.1} parent=1 // pred_region
      %s62 = ssub.s32 2048, 2048
      %63 = vsyncadd [#allocation9], %s62
      %s64 = sshll.u32 [#allocation8], 4
      %s65 = int_to_ptr.vmem [resolvable:$true] %s64
      %70 = dma.hbm_to_vmem [thread:$0]  %s5, 2048, %s65, [#allocation9], 128, 128, 8
    $region25: #{tpu_custom_call.1} parent=1 // pred_fallthru
      _
    // Predicated region
    $region26: #{tpu_custom_call.1} parent=1 // pred_check
      _
    $region27: #{tpu_custom_call.1} parent=1 // pred_check_branch
      %72 = sbr.rel (0) target = $region29
    $region28: #{tpu_custom_call.1} parent=1 // pred_region
      _
    $region29: #{tpu_custom_call.1} parent=1 // pred_fallthru
      _
    // Predicated region
    $region30: #{tpu_custom_call.1} parent=1 // pred_check
      _
    $region31: #{tpu_custom_call.1} parent=1 // pred_check_branch
      %74 = sbr.rel (0) target = $region33
    $region32: #{tpu_custom_call.1} parent=1 // pred_region
      %s76 = ssub.s32 2048, 2048
      %77 = vsyncadd [#allocation9], %s76
      %s78 = sshll.u32 [#allocation10], 4
      %s79 = int_to_ptr.vmem [resolvable:$true] %s78
      %84 = dma.hbm_to_vmem [thread:$0]  %s7, 2048, %s79, [#allocation9], 128, 128, 8
    $region33: #{tpu_custom_call.1} parent=1 // pred_fallthru
      _
    // Predicated region
    $region34: #{tpu_custom_call.1} parent=1 // pred_check
      _
    $region35: #{tpu_custom_call.1} parent=1 // pred_check_branch
      %86 = sbr.rel (0) target = $region37
    $region36: #{tpu_custom_call.1} parent=1 // pred_region
      _
    $region37: #{tpu_custom_call.1} parent=1 // pred_fallthru
      _
    // Predicated region
    $region38: #{tpu_custom_call.1} parent=1 // pred_check
      _
    $region39: #{tpu_custom_call.1} parent=1 // pred_check_branch
      %88 = sbr.rel (0) target = $region41
    $region40: #{tpu_custom_call.1} parent=1 // pred_region
      %s90 = ssub.s32 2048, 2048
      %91 = vsyncadd [#allocation12], %s90
      %s92 = sshll.u32 [#allocation11], 4
      %s93 = int_to_ptr.vmem [resolvable:$true] %s92
      %98 = dma.hbm_to_vmem [thread:$0]  %s9, 2048, %s93, [#allocation12], 128, 128, 8
    $region41: #{tpu_custom_call.1} parent=1 // pred_fallthru
      _
    // Predicated region
    $region42: #{tpu_custom_call.1} parent=1 // pred_check
      _
    $region43: #{tpu_custom_call.1} parent=1 // pred_check_branch
      %100 = sbr.rel (0) target = $region45
    $region44: #{tpu_custom_call.1} parent=1 // pred_region
      _
    $region45: #{tpu_custom_call.1} parent=1 // pred_fallthru
      _
    // Predicated region
    $region46: #{tpu_custom_call.1} parent=1 // pred_check
      _
    $region47: #{tpu_custom_call.1} parent=1 // pred_check_branch
      %102 = sbr.rel (0) target = $region49
    $region48: #{tpu_custom_call.1} parent=1 // pred_region
      %103 = dma.done [#allocation3], 128
    $region49: #{tpu_custom_call.1} parent=1 // pred_fallthru
      _
    // Predicated region
    $region50: #{tpu_custom_call.1} parent=1 // pred_check
      _
    $region51: #{tpu_custom_call.1} parent=1 // pred_check_branch
      %105 = sbr.rel (0) target = $region53
    $region52: #{tpu_custom_call.1} parent=1 // pred_region
      %106 = dma.done [#allocation6], 512
    $region53: #{tpu_custom_call.1} parent=1 // pred_fallthru
      _
    // Predicated region
    $region54: #{tpu_custom_call.1} parent=1 // pred_check
      _
    $region55: #{tpu_custom_call.1} parent=1 // pred_check_branch
      %108 = sbr.rel (0) target = $region57
    $region56: #{tpu_custom_call.1} parent=1 // pred_region
      %109 = dma.done [#allocation6], 2048
    $region57: #{tpu_custom_call.1} parent=1 // pred_fallthru
      _
    // Predicated region
    $region58: #{tpu_custom_call.1} parent=1 // pred_check
      _
    $region59: #{tpu_custom_call.1} parent=1 // pred_check_branch
      %111 = sbr.rel (0) target = $region61
    $region60: #{tpu_custom_call.1} parent=1 // pred_region
      %112 = dma.done [#allocation9], 2048
    $region61: #{tpu_custom_call.1} parent=1 // pred_fallthru
      _
    // Predicated region
    $region62: #{tpu_custom_call.1} parent=1 // pred_check
      _
    $region63: #{tpu_custom_call.1} parent=1 // pred_check_branch
      %114 = sbr.rel (0) target = $region65
    $region64: #{tpu_custom_call.1} parent=1 // pred_region
      %115 = dma.done [#allocation9], 2048
    $region65: #{tpu_custom_call.1} parent=1 // pred_fallthru
      _
    // Predicated region
    $region66: #{tpu_custom_call.1} parent=1 // pred_check
      _
    $region67: #{tpu_custom_call.1} parent=1 // pred_check_branch
      %117 = sbr.rel (0) target = $region69
    $region68: #{tpu_custom_call.1} parent=1 // pred_region
      %118 = dma.done [#allocation12], 2048
    $region69: #{tpu_custom_call.1} parent=1 // pred_fallthru
      _
    %v119 = vld [vmem:[#allocation2] sm:$0xff]
    %v120 = vld [vmem:[#allocation5] sm:$0xff]
    %v121 = vld [vmem:[#allocation5 + $0x8] sm:$0xff]
    %v122 = vld [vmem:[#allocation5 + $0x10] sm:$0xff]
    %v123 = vld [vmem:[#allocation5 + $0x18] sm:$0xff]
    %v124 = vld [vmem:[%s2] sm:$0x1]
    %v126 = vlaneseq
    %v127 = vshrl.u32 %v126, 7
    %v128 = vsub.s32 0, %v127
    %v129 = vrot.slane %v124, %v128
    %vm131 = vcmask 261120
    %v133 = vsel %vm131, %v119, 0
    %135 = vmatprep.subr.mxu0 0.0
    %136 = vmatpush1.msra.mxu0 %v120
    %137 = vmatprep.subr.mxu0 0.0
    %138 = vmatpush1.msra.mxu0 %v121
    %139 = vmatprep.subr.mxu0 0.0
    %140 = vmatpush1.msra.mxu0 %v122
    %141 = vmatprep.subr.mxu0 0.0
    %142 = vmatpush1.msra.mxu0 %v123
    %143 = vmatprep.subr.mxu0 0.0
    %144 = vmatpush1.msra.mxu0 0.0
    %145 = vmatprep.subr.mxu0 0.0
    %146 = vmatpush1.msra.mxu0 0.0
    %147 = vmatprep.subr.mxu0 0.0
    %148 = vmatpush1.msra.mxu0 0.0
    %149 = vmatprep.subr.mxu0 0.0
    %150 = vmatpush1.msra.mxu0 0.0
    %151 = vmatprep.subr.mxu0 0.0
    %152 = vmatpush1.msra.mxu0 0.0
    %153 = vmatprep.subr.mxu0 0.0
    %154 = vmatpush1.msra.mxu0 0.0
    %155 = vmatprep.subr.mxu0 0.0
    %156 = vmatpush1.msra.mxu0 0.0
    %157 = vmatprep.subr.mxu0 0.0
    %158 = vmatpush1.msra.mxu0 0.0
    %159 = vmatprep.subr.mxu0 0.0
    %160 = vmatpush1.msra.mxu0 0.0
    %161 = vmatprep.subr.mxu0 0.0
    %162 = vmatpush1.msra.mxu0 0.0
    %163 = vmatprep.subr.mxu0 0.0
    %164 = vmatpush1.msra.mxu0 0.0
    %165 = vmatprep.subr.mxu0 0.0
    %166 = vmatpush1.msra.mxu0 0.0
    %167 = vmatprep.subr.mxu0 0.0
    %168 = vmatpush1.msra.mxu0 0.0
    %169 = vmatprep.subr.mxu0 0.0
    %170 = vmatpush1.msra.mxu0 0.0
    %171 = vmatprep.subr.mxu0 0.0
    %172 = vmatpush1.msra.mxu0 0.0
    %173 = vmatprep.subr.mxu0 0.0
    %174 = vmatpush1.msra.mxu0 0.0
    %175 = vmatprep.subr.mxu0 0.0
    %176 = vmatpush1.msra.mxu0 0.0
    %177 = vmatprep.subr.mxu0 0.0
    %178 = vmatpush1.msra.mxu0 0.0
    %179 = vmatprep.subr.mxu0 0.0
    %180 = vmatpush1.msra.mxu0 0.0
    %181 = vmatprep.subr.mxu0 0.0
    %182 = vmatpush1.msra.mxu0 0.0
    %183 = vmatprep.subr.mxu0 0.0
    %184 = vmatpush1.msra.mxu0 0.0
    %185 = vmatprep.subr.mxu0 0.0
    %186 = vmatpush1.msra.mxu0 0.0
    %187 = vmatprep.subr.mxu0 0.0
    %188 = vmatpush1.msra.mxu0 0.0
    %189 = vmatprep.subr.mxu0 0.0
    %190 = vmatpush1.msra.mxu0 0.0
    %191 = vmatprep.subr.mxu0 0.0
    %192 = vmatpush1.msra.mxu0 0.0
    %193 = vmatprep.subr.mxu0 0.0
    %194 = vmatpush1.msra.mxu0 0.0
    %195 = vmatprep.subr.mxu0 0.0
    %196 = vmatpush1.msra.mxu0 0.0
    %197 = vmatprep.subr.mxu0 0.0
    %198 = vmatpush1.msra.mxu0 0.0
    %199 = vmatprep.mubr.f32.mxu0 0.0
    %200 = vmatmul.mubr.f32.gmra.mrb[0].mxu0 %v133
    %v201 = vpop.f32.mrb[0].mxu0
    %v202 = vadd.f32 %v129, %v201
    %v203 = vpop.f32.mrb[0].mxu0
    %204 = vdwg.mxu0
    %v205 = vmax.f32 %v202, 0.0
    %v206 = vld [vmem:[#allocation7] sm:$0xff]
    %v207 = vld [vmem:[#allocation7 + $0x8] sm:$0xff]
    %v208 = vld [vmem:[#allocation7 + $0x10] sm:$0xff]
    %v209 = vld [vmem:[#allocation7 + $0x18] sm:$0xff]
    %v210 = vld [vmem:[#allocation7 + $0x20] sm:$0xff]
    %v211 = vld [vmem:[#allocation7 + $0x28] sm:$0xff]
    %v212 = vld [vmem:[#allocation7 + $0x30] sm:$0xff]
    %v213 = vld [vmem:[#allocation7 + $0x38] sm:$0xff]
    %v214 = vld [vmem:[#allocation7 + $0x40] sm:$0xff]
    %v215 = vld [vmem:[#allocation7 + $0x48] sm:$0xff]
    %v216 = vld [vmem:[#allocation7 + $0x50] sm:$0xff]
    %v217 = vld [vmem:[#allocation7 + $0x58] sm:$0xff]
    %v218 = vld [vmem:[#allocation7 + $0x60] sm:$0xff]
    %v219 = vld [vmem:[#allocation7 + $0x68] sm:$0xff]
    %v220 = vld [vmem:[#allocation7 + $0x70] sm:$0xff]
    %v221 = vld [vmem:[#allocation7 + $0x78] sm:$0xff]
    %v222 = vld [vmem:[%s4] sm:$0x1]
    %v224 = vlaneseq
    %v225 = vshrl.u32 %v224, 7
    %v226 = vsub.s32 0, %v225
    %v227 = vrot.slane %v222, %v226
    %229 = vmatprep.subr.mxu0 0.0
    %230 = vmatpush1.msra.mxu0 %v206
    %231 = vmatprep.subr.mxu0 0.0
    %232 = vmatpush1.msra.mxu0 %v207
    %233 = vmatprep.subr.mxu0 0.0
    %234 = vmatpush1.msra.mxu0 %v208
    %235 = vmatprep.subr.mxu0 0.0
    %236 = vmatpush1.msra.mxu0 %v209
    %237 = vmatprep.subr.mxu0 0.0
    %238 = vmatpush1.msra.mxu0 %v210
    %239 = vmatprep.subr.mxu0 0.0
    %240 = vmatpush1.msra.mxu0 %v211
    %241 = vmatprep.subr.mxu0 0.0
    %242 = vmatpush1.msra.mxu0 %v212
    %243 = vmatprep.subr.mxu0 0.0
    %244 = vmatpush1.msra.mxu0 %v213
    %245 = vmatprep.subr.mxu0 0.0
    %246 = vmatpush1.msra.mxu0 %v214
    %247 = vmatprep.subr.mxu0 0.0
    %248 = vmatpush1.msra.mxu0 %v215
    %249 = vmatprep.subr.mxu0 0.0
    %250 = vmatpush1.msra.mxu0 %v216
    %251 = vmatprep.subr.mxu0 0.0
    %252 = vmatpush1.msra.mxu0 %v217
    %253 = vmatprep.subr.mxu0 0.0
    %254 = vmatpush1.msra.mxu0 %v218
    %255 = vmatprep.subr.mxu0 0.0
    %256 = vmatpush1.msra.mxu0 %v219
    %257 = vmatprep.subr.mxu0 0.0
    %258 = vmatpush1.msra.mxu0 %v220
    %259 = vmatprep.subr.mxu0 0.0
    %260 = vmatpush1.msra.mxu0 %v221
    %261 = vmatprep.subr.mxu0 0.0
    %262 = vmatpush1.msra.mxu0 0.0
    %263 = vmatprep.subr.mxu0 0.0
    %264 = vmatpush1.msra.mxu0 0.0
    %265 = vmatprep.subr.mxu0 0.0
    %266 = vmatpush1.msra.mxu0 0.0
    %267 = vmatprep.subr.mxu0 0.0
    %268 = vmatpush1.msra.mxu0 0.0
    %269 = vmatprep.subr.mxu0 0.0
    %270 = vmatpush1.msra.mxu0 0.0
    %271 = vmatprep.subr.mxu0 0.0
    %272 = vmatpush1.msra.mxu0 0.0
    %273 = vmatprep.subr.mxu0 0.0
    %274 = vmatpush1.msra.mxu0 0.0
    %275 = vmatprep.subr.mxu0 0.0
    %276 = vmatpush1.msra.mxu0 0.0
    %277 = vmatprep.subr.mxu0 0.0
    %278 = vmatpush1.msra.mxu0 0.0
    %279 = vmatprep.subr.mxu0 0.0
    %280 = vmatpush1.msra.mxu0 0.0
    %281 = vmatprep.subr.mxu0 0.0
    %282 = vmatpush1.msra.mxu0 0.0
    %283 = vmatprep.subr.mxu0 0.0
    %284 = vmatpush1.msra.mxu0 0.0
    %285 = vmatprep.subr.mxu0 0.0
    %286 = vmatpush1.msra.mxu0 0.0
    %287 = vmatprep.subr.mxu0 0.0
    %288 = vmatpush1.msra.mxu0 0.0
    %289 = vmatprep.subr.mxu0 0.0
    %290 = vmatpush1.msra.mxu0 0.0
    %291 = vmatprep.subr.mxu0 0.0
    %292 = vmatpush1.msra.mxu0 0.0
    %293 = vmatprep.mubr.f32.mxu0 0.0
    %294 = vmatmul.mubr.f32.gmra.mrb[0].mxu0 %v205
    %v295 = vpop.f32.mrb[0].mxu0
    %v296 = vadd.f32 %v227, %v295
    %v297 = vpop.f32.mrb[0].mxu0
    %298 = vdwg.mxu0
    %v299 = vmax.f32 %v296, 0.0
    %v300 = vld [vmem:[#allocation8] sm:$0xff]
    %v301 = vld [vmem:[#allocation8 + $0x8] sm:$0xff]
    %v302 = vld [vmem:[#allocation8 + $0x10] sm:$0xff]
    %v303 = vld [vmem:[#allocation8 + $0x18] sm:$0xff]
    %v304 = vld [vmem:[#allocation8 + $0x20] sm:$0xff]
    %v305 = vld [vmem:[#allocation8 + $0x28] sm:$0xff]
    %v306 = vld [vmem:[#allocation8 + $0x30] sm:$0xff]
    %v307 = vld [vmem:[#allocation8 + $0x38] sm:$0xff]
    %v308 = vld [vmem:[#allocation8 + $0x40] sm:$0xff]
    %v309 = vld [vmem:[#allocation8 + $0x48] sm:$0xff]
    %v310 = vld [vmem:[#allocation8 + $0x50] sm:$0xff]
    %v311 = vld [vmem:[#allocation8 + $0x58] sm:$0xff]
    %v312 = vld [vmem:[#allocation8 + $0x60] sm:$0xff]
    %v313 = vld [vmem:[#allocation8 + $0x68] sm:$0xff]
    %v314 = vld [vmem:[#allocation8 + $0x70] sm:$0xff]
    %v315 = vld [vmem:[#allocation8 + $0x78] sm:$0xff]
    %v316 = vld [vmem:[%s6] sm:$0x1]
    %v318 = vlaneseq
    %v319 = vshrl.u32 %v318, 7
    %v320 = vsub.s32 0, %v319
    %v321 = vrot.slane %v316, %v320
    %323 = vmatprep.subr.mxu0 0.0
    %324 = vmatpush1.msra.mxu0 %v300
    %325 = vmatprep.subr.mxu0 0.0
    %326 = vmatpush1.msra.mxu0 %v301
    %327 = vmatprep.subr.mxu0 0.0
    %328 = vmatpush1.msra.mxu0 %v302
    %329 = vmatprep.subr.mxu0 0.0
    %330 = vmatpush1.msra.mxu0 %v303
    %331 = vmatprep.subr.mxu0 0.0
    %332 = vmatpush1.msra.mxu0 %v304
    %333 = vmatprep.subr.mxu0 0.0
    %334 = vmatpush1.msra.mxu0 %v305
    %335 = vmatprep.subr.mxu0 0.0
    %336 = vmatpush1.msra.mxu0 %v306
    %337 = vmatprep.subr.mxu0 0.0
    %338 = vmatpush1.msra.mxu0 %v307
    %339 = vmatprep.subr.mxu0 0.0
    %340 = vmatpush1.msra.mxu0 %v308
    %341 = vmatprep.subr.mxu0 0.0
    %342 = vmatpush1.msra.mxu0 %v309
    %343 = vmatprep.subr.mxu0 0.0
    %344 = vmatpush1.msra.mxu0 %v310
    %345 = vmatprep.subr.mxu0 0.0
    %346 = vmatpush1.msra.mxu0 %v311
    %347 = vmatprep.subr.mxu0 0.0
    %348 = vmatpush1.msra.mxu0 %v312
    %349 = vmatprep.subr.mxu0 0.0
    %350 = vmatpush1.msra.mxu0 %v313
    %351 = vmatprep.subr.mxu0 0.0
    %352 = vmatpush1.msra.mxu0 %v314
    %353 = vmatprep.subr.mxu0 0.0
    %354 = vmatpush1.msra.mxu0 %v315
    %355 = vmatprep.subr.mxu0 0.0
    %356 = vmatpush1.msra.mxu0 0.0
    %357 = vmatprep.subr.mxu0 0.0
    %358 = vmatpush1.msra.mxu0 0.0
    %359 = vmatprep.subr.mxu0 0.0
    %360 = vmatpush1.msra.mxu0 0.0
    %361 = vmatprep.subr.mxu0 0.0
    %362 = vmatpush1.msra.mxu0 0.0
    %363 = vmatprep.subr.mxu0 0.0
    %364 = vmatpush1.msra.mxu0 0.0
    %365 = vmatprep.subr.mxu0 0.0
    %366 = vmatpush1.msra.mxu0 0.0
    %367 = vmatprep.subr.mxu0 0.0
    %368 = vmatpush1.msra.mxu0 0.0
    %369 = vmatprep.subr.mxu0 0.0
    %370 = vmatpush1.msra.mxu0 0.0
    %371 = vmatprep.subr.mxu0 0.0
    %372 = vmatpush1.msra.mxu0 0.0
    %373 = vmatprep.subr.mxu0 0.0
    %374 = vmatpush1.msra.mxu0 0.0
    %375 = vmatprep.subr.mxu0 0.0
    %376 = vmatpush1.msra.mxu0 0.0
    %377 = vmatprep.subr.mxu0 0.0
    %378 = vmatpush1.msra.mxu0 0.0
    %379 = vmatprep.subr.mxu0 0.0
    %380 = vmatpush1.msra.mxu0 0.0
    %381 = vmatprep.subr.mxu0 0.0
    %382 = vmatpush1.msra.mxu0 0.0
    %383 = vmatprep.subr.mxu0 0.0
    %384 = vmatpush1.msra.mxu0 0.0
    %385 = vmatprep.subr.mxu0 0.0
    %386 = vmatpush1.msra.mxu0 0.0
    %387 = vmatprep.mubr.f32.mxu0 0.0
    %388 = vmatmul.mubr.f32.gmra.mrb[0].mxu0 %v299
    %v389 = vpop.f32.mrb[0].mxu0
    %v390 = vadd.f32 %v321, %v389
    %v391 = vpop.f32.mrb[0].mxu0
    %392 = vdwg.mxu0
    %v393 = vmax.f32 %v390, 0.0
    %v394 = vld [vmem:[#allocation10] sm:$0xff]
    %v395 = vld [vmem:[#allocation10 + $0x8] sm:$0xff]
    %v396 = vld [vmem:[#allocation10 + $0x10] sm:$0xff]
    %v397 = vld [vmem:[#allocation10 + $0x18] sm:$0xff]
    %v398 = vld [vmem:[#allocation10 + $0x20] sm:$0xff]
    %v399 = vld [vmem:[#allocation10 + $0x28] sm:$0xff]
    %v400 = vld [vmem:[#allocation10 + $0x30] sm:$0xff]
    %v401 = vld [vmem:[#allocation10 + $0x38] sm:$0xff]
    %v402 = vld [vmem:[#allocation10 + $0x40] sm:$0xff]
    %v403 = vld [vmem:[#allocation10 + $0x48] sm:$0xff]
    %v404 = vld [vmem:[#allocation10 + $0x50] sm:$0xff]
    %v405 = vld [vmem:[#allocation10 + $0x58] sm:$0xff]
    %v406 = vld [vmem:[#allocation10 + $0x60] sm:$0xff]
    %v407 = vld [vmem:[#allocation10 + $0x68] sm:$0xff]
    %v408 = vld [vmem:[#allocation10 + $0x70] sm:$0xff]
    %v409 = vld [vmem:[#allocation10 + $0x78] sm:$0xff]
    %v410 = vld [vmem:[%s8] sm:$0x1]
    %v412 = vlaneseq
    %v413 = vshrl.u32 %v412, 7
    %v414 = vsub.s32 0, %v413
    %v415 = vrot.slane %v410, %v414
    %417 = vmatprep.subr.mxu0 0.0
    %418 = vmatpush1.msra.mxu0 %v394
    %419 = vmatprep.subr.mxu0 0.0
    %420 = vmatpush1.msra.mxu0 %v395
    %421 = vmatprep.subr.mxu0 0.0
    %422 = vmatpush1.msra.mxu0 %v396
    %423 = vmatprep.subr.mxu0 0.0
    %424 = vmatpush1.msra.mxu0 %v397
    %425 = vmatprep.subr.mxu0 0.0
    %426 = vmatpush1.msra.mxu0 %v398
    %427 = vmatprep.subr.mxu0 0.0
    %428 = vmatpush1.msra.mxu0 %v399
    %429 = vmatprep.subr.mxu0 0.0
    %430 = vmatpush1.msra.mxu0 %v400
    %431 = vmatprep.subr.mxu0 0.0
    %432 = vmatpush1.msra.mxu0 %v401
    %433 = vmatprep.subr.mxu0 0.0
    %434 = vmatpush1.msra.mxu0 %v402
    %435 = vmatprep.subr.mxu0 0.0
    %436 = vmatpush1.msra.mxu0 %v403
    %437 = vmatprep.subr.mxu0 0.0
    %438 = vmatpush1.msra.mxu0 %v404
    %439 = vmatprep.subr.mxu0 0.0
    %440 = vmatpush1.msra.mxu0 %v405
    %441 = vmatprep.subr.mxu0 0.0
    %442 = vmatpush1.msra.mxu0 %v406
    %443 = vmatprep.subr.mxu0 0.0
    %444 = vmatpush1.msra.mxu0 %v407
    %445 = vmatprep.subr.mxu0 0.0
    %446 = vmatpush1.msra.mxu0 %v408
    %447 = vmatprep.subr.mxu0 0.0
    %448 = vmatpush1.msra.mxu0 %v409
    %449 = vmatprep.subr.mxu0 0.0
    %450 = vmatpush1.msra.mxu0 0.0
    %451 = vmatprep.subr.mxu0 0.0
    %452 = vmatpush1.msra.mxu0 0.0
    %453 = vmatprep.subr.mxu0 0.0
    %454 = vmatpush1.msra.mxu0 0.0
    %455 = vmatprep.subr.mxu0 0.0
    %456 = vmatpush1.msra.mxu0 0.0
    %457 = vmatprep.subr.mxu0 0.0
    %458 = vmatpush1.msra.mxu0 0.0
    %459 = vmatprep.subr.mxu0 0.0
    %460 = vmatpush1.msra.mxu0 0.0
    %461 = vmatprep.subr.mxu0 0.0
    %462 = vmatpush1.msra.mxu0 0.0
    %463 = vmatprep.subr.mxu0 0.0
    %464 = vmatpush1.msra.mxu0 0.0
    %465 = vmatprep.subr.mxu0 0.0
    %466 = vmatpush1.msra.mxu0 0.0
    %467 = vmatprep.subr.mxu0 0.0
    %468 = vmatpush1.msra.mxu0 0.0
    %469 = vmatprep.subr.mxu0 0.0
    %470 = vmatpush1.msra.mxu0 0.0
    %471 = vmatprep.subr.mxu0 0.0
    %472 = vmatpush1.msra.mxu0 0.0
    %473 = vmatprep.subr.mxu0 0.0
    %474 = vmatpush1.msra.mxu0 0.0
    %475 = vmatprep.subr.mxu0 0.0
    %476 = vmatpush1.msra.mxu0 0.0
    %477 = vmatprep.subr.mxu0 0.0
    %478 = vmatpush1.msra.mxu0 0.0
    %479 = vmatprep.subr.mxu0 0.0
    %480 = vmatpush1.msra.mxu0 0.0
    %481 = vmatprep.mubr.f32.mxu0 0.0
    %482 = vmatmul.mubr.f32.gmra.mrb[0].mxu0 %v393
    %v483 = vpop.f32.mrb[0].mxu0
    %v484 = vadd.f32 %v415, %v483
    %v485 = vpop.f32.mrb[0].mxu0
    %486 = vdwg.mxu0
    %v487 = vmax.f32 %v484, 0.0
    %v488 = vld [vmem:[#allocation11] sm:$0xff]
    %v489 = vld [vmem:[#allocation11 + $0x8] sm:$0xff]
    %v490 = vld [vmem:[#allocation11 + $0x10] sm:$0xff]
    %v491 = vld [vmem:[#allocation11 + $0x18] sm:$0xff]
    %v492 = vld [vmem:[#allocation11 + $0x20] sm:$0xff]
    %v493 = vld [vmem:[#allocation11 + $0x28] sm:$0xff]
    %v494 = vld [vmem:[#allocation11 + $0x30] sm:$0xff]
    %v495 = vld [vmem:[#allocation11 + $0x38] sm:$0xff]
    %v496 = vld [vmem:[#allocation11 + $0x40] sm:$0xff]
    %v497 = vld [vmem:[#allocation11 + $0x48] sm:$0xff]
    %v498 = vld [vmem:[#allocation11 + $0x50] sm:$0xff]
    %v499 = vld [vmem:[#allocation11 + $0x58] sm:$0xff]
    %v500 = vld [vmem:[#allocation11 + $0x60] sm:$0xff]
    %v501 = vld [vmem:[#allocation11 + $0x68] sm:$0xff]
    %v502 = vld [vmem:[#allocation11 + $0x70] sm:$0xff]
    %v503 = vld [vmem:[#allocation11 + $0x78] sm:$0xff]
    %v504 = vld [vmem:[%s10] sm:$0x1]
    %v506 = vlaneseq
    %v507 = vshrl.u32 %v506, 7
    %v508 = vsub.s32 0, %v507
    %v509 = vrot.slane %v504, %v508
    %511 = vmatprep.subr.mxu0 0.0
    %512 = vmatpush1.msra.mxu0 %v488
    %513 = vmatprep.subr.mxu0 0.0
    %514 = vmatpush1.msra.mxu0 %v489
    %515 = vmatprep.subr.mxu0 0.0
    %516 = vmatpush1.msra.mxu0 %v490
    %517 = vmatprep.subr.mxu0 0.0
    %518 = vmatpush1.msra.mxu0 %v491
    %519 = vmatprep.subr.mxu0 0.0
    %520 = vmatpush1.msra.mxu0 %v492
    %521 = vmatprep.subr.mxu0 0.0
    %522 = vmatpush1.msra.mxu0 %v493
    %523 = vmatprep.subr.mxu0 0.0
    %524 = vmatpush1.msra.mxu0 %v494
    %525 = vmatprep.subr.mxu0 0.0
    %526 = vmatpush1.msra.mxu0 %v495
    %527 = vmatprep.subr.mxu0 0.0
    %528 = vmatpush1.msra.mxu0 %v496
    %529 = vmatprep.subr.mxu0 0.0
    %530 = vmatpush1.msra.mxu0 %v497
    %531 = vmatprep.subr.mxu0 0.0
    %532 = vmatpush1.msra.mxu0 %v498
    %533 = vmatprep.subr.mxu0 0.0
    %534 = vmatpush1.msra.mxu0 %v499
    %535 = vmatprep.subr.mxu0 0.0
    %536 = vmatpush1.msra.mxu0 %v500
    %537 = vmatprep.subr.mxu0 0.0
    %538 = vmatpush1.msra.mxu0 %v501
    %539 = vmatprep.subr.mxu0 0.0
    %540 = vmatpush1.msra.mxu0 %v502
    %541 = vmatprep.subr.mxu0 0.0
    %542 = vmatpush1.msra.mxu0 %v503
    %543 = vmatprep.subr.mxu0 0.0
    %544 = vmatpush1.msra.mxu0 0.0
    %545 = vmatprep.subr.mxu0 0.0
    %546 = vmatpush1.msra.mxu0 0.0
    %547 = vmatprep.subr.mxu0 0.0
    %548 = vmatpush1.msra.mxu0 0.0
    %549 = vmatprep.subr.mxu0 0.0
    %550 = vmatpush1.msra.mxu0 0.0
    %551 = vmatprep.subr.mxu0 0.0
    %552 = vmatpush1.msra.mxu0 0.0
    %553 = vmatprep.subr.mxu0 0.0
    %554 = vmatpush1.msra.mxu0 0.0
    %555 = vmatprep.subr.mxu0 0.0
    %556 = vmatpush1.msra.mxu0 0.0
    %557 = vmatprep.subr.mxu0 0.0
    %558 = vmatpush1.msra.mxu0 0.0
    %559 = vmatprep.subr.mxu0 0.0
    %560 = vmatpush1.msra.mxu0 0.0
    %561 = vmatprep.subr.mxu0 0.0
    %562 = vmatpush1.msra.mxu0 0.0
    %563 = vmatprep.subr.mxu0 0.0
    %564 = vmatpush1.msra.mxu0 0.0
    %565 = vmatprep.subr.mxu0 0.0
    %566 = vmatpush1.msra.mxu0 0.0
    %567 = vmatprep.subr.mxu0 0.0
    %568 = vmatpush1.msra.mxu0 0.0
    %569 = vmatprep.subr.mxu0 0.0
    %570 = vmatpush1.msra.mxu0 0.0
    %571 = vmatprep.subr.mxu0 0.0
    %572 = vmatpush1.msra.mxu0 0.0
    %573 = vmatprep.subr.mxu0 0.0
    %574 = vmatpush1.msra.mxu0 0.0
    %575 = vmatprep.mubr.f32.mxu0 0.0
    %576 = vmatmul.mubr.f32.gmra.mrb[0].mxu0 %v487
    %v577 = vpop.f32.mrb[0].mxu0
    %v578 = vadd.f32 %v509, %v577
    %v579 = vpop.f32.mrb[0].mxu0
    %580 = vdwg.mxu0
    %581 = vst [vmem:[#allocation13] sm:$0xff] %v578
    // Predicated region
    $region70: #{tpu_custom_call.1} parent=1 // pred_check
      _
    $region71: #{tpu_custom_call.1} parent=1 // pred_check_branch
      %583 = sbr.rel (0) target = $region73
    $region72: #{tpu_custom_call.1} parent=1 // pred_region
      %s585 = ssub.s32 128, 128
      %586 = vsyncadd [#allocation4], %s585
      %s588 = sshll.u32 [#allocation13], 4
      %s589 = int_to_ptr.vmem [resolvable:$true] %s588
      %591 = dma.vmem_to_hbm [thread:$0]  %s589, 128, %s11, [#allocation4]
    $region73: #{tpu_custom_call.1} parent=1 // pred_fallthru
      _
    // Predicated region
    $region74: #{tpu_custom_call.1} parent=1 // pred_check
      _
    $region75: #{tpu_custom_call.1} parent=1 // pred_check_branch
      %593 = sbr.rel (0) target = $region77
    $region76: #{tpu_custom_call.1} parent=1 // pred_region
      %594 = dma.done [#allocation4], 128
    $region77: #{tpu_custom_call.1} parent=1 // pred_fallthru
      _
    %595 = vsyncpa [#allocation3], 1
    %596 = vsyncpa [#allocation6], 1
    %597 = vsyncpa [#allocation9], 1
    %598 = vsyncpa [#allocation12], 1
    %599 = vsyncpa [#allocation4], 1

</llo_original>
